<compile_context>
chip_gen: v6e
topology: v6e:2x2x1
jax: 0.10.0
libtpu: 0.0.40
codegen_flags: <defaults>
</compile_context>

<pallas_src>
import functools

import jax
import jax.numpy as jnp
from jax.experimental import pallas as pl
from jax.experimental.pallas import tpu as pltpu


def _experts_kernel(hs_ref, gate_ref, up_ref, down_ref, out_ref, acc_ref, *,
                    compute_dtype):
    # hs_ref  : (tT, H)   input dtype
    # gate_ref: (H, tI)   weight dtype
    # up_ref  : (H, tI)   weight dtype
    # down_ref: (tI, H)   weight dtype
    # out_ref : (tT, H)   output dtype (same block across the I-tile axis)
    # acc_ref : (tT, H)   f32 VMEM accumulator
    i = pl.program_id(2)

    @pl.when(i == 0)
    def _init():
        acc_ref[...] = jnp.zeros_like(acc_ref)

    # Per-tile casts (no-ops when operands already arrive in compute_dtype).
    hs = hs_ref[...].astype(compute_dtype)                            # (tT, H)
    gate_w = gate_ref[...].astype(compute_dtype)                      # (H, tI)
    up_w = up_ref[...].astype(compute_dtype)                          # (H, tI)
    down_w = down_ref[...].astype(compute_dtype)                      # (tI, H)

    gate = jnp.dot(hs, gate_w, preferred_element_type=jnp.float32)    # (tT, tI) f32
    up = jnp.dot(hs, up_w, preferred_element_type=jnp.float32)        # (tT, tI) f32

    # SiLU gating (hidden_act = "silu" for Llama4), kept in f32 on the VPU/EUP.
    # TODO(synk): other ACT2FN choices from the config are not plumbed through;
    #             SiLU is hard-coded here.
    inter = up * (gate * jax.nn.sigmoid(gate))                        # (tT, tI) f32

    acc_ref[...] += jnp.dot(inter.astype(compute_dtype), down_w,
                            preferred_element_type=jnp.float32)       # (tT, H) f32

    @pl.when(i == pl.num_programs(2) - 1)
    def _store():
        out_ref[...] = acc_ref[...].astype(out_ref.dtype)


def _round_up(x, m):
    return ((x + m - 1) // m) * m


def _pick_tile(dim, preferred, multiple):
    """Largest divisor of `dim` that is <= preferred and a multiple of `multiple`."""
    best = None
    t = multiple
    while t <= min(dim, preferred):
        if dim % t == 0:
            best = t
        t += multiple
    return best if best is not None else dim


def _tpu_generation():
    try:
        kind = jax.devices()[0].device_kind.lower()
    except Exception:
        return "unknown"
    if "v7" in kind:
        return "v7x"
    if "v6" in kind:
        return "v6e"
    if "v5p" in kind:
        return "v5p"
    if "v5" in kind:  # v5e / "v5 lite"
        return "v5e"
    return "unknown"


def _vmem_capacity_bytes():
    try:
        return int(pltpu.get_tpu_info().vmem_capacity_bytes)
    except Exception:
        return 64 << 20  # conservative: v7x per-TensorCore VMEM


# (tokens_tile_pref, i_tile_pref, single_buffer_hs_out)
#   v6e: break-even tT ~ 918 TF/s / 1.4 TB/s ~ 650 tokens -> large token tile.
#   v7x: break-even ~310 tokens, but only 64 MiB VMEM -> tT~384, tI=256,
#        single-buffer hs/out (block index invariant across the inner I axis).
#   v5e: compute-bound already at tT~256; spend 128 MiB VMEM on a big I tile
#        to halve grid-step overhead and accumulator read-modify-write passes.
_GEN_DEFAULTS = {
    "v5e": (256, 1024, False),
    "v5p": (256, 512, False),
    "v6e": (512, 512, False),
    "v7x": (384, 256, True),
    "unknown": (256, 256, True),
}


def llama4_text_experts(hidden_states, gate_up_proj, down_proj, *,
                        tokens_tile=None, i_tile=None,
                        compute_dtype=jnp.bfloat16,
                        single_buffer_io=None):
    """Pallas equivalent of Llama4TextExperts.forward.

    Args:
      hidden_states: (num_experts * tokens_per_expert, hidden_size)
      gate_up_proj : (num_experts, hidden_size, 2 * expert_dim)
      down_proj    : (num_experts, expert_dim, hidden_size)
    Returns:
      (num_experts * tokens_per_expert, hidden_size) in hidden_states.dtype
    """
    num_experts, hidden_size, two_i = gate_up_proj.shape
    expert_dim = two_i // 2
    assert down_proj.shape == (num_experts, expert_dim, hidden_size)

    total_tokens = hidden_states.shape[0]
    assert total_tokens % num_experts == 0, (
        "hidden_states rows must be evenly grouped per expert (module contract)")
    tokens_per_expert = total_tokens // num_experts
    out_dtype = hidden_states.dtype

    gen = _tpu_generation()
    t_pref, i_pref, sbuf_default = _GEN_DEFAULTS.get(gen, _GEN_DEFAULTS["unknown"])
    if single_buffer_io is None:
        single_buffer_io = sbuf_default

    if tokens_tile is None:
        # Balanced token tiles near the per-generation preference, rounded up to
        # a multiple of 16 (bf16 sublane packing).
        n_t = -(-tokens_per_expert // t_pref)
        tokens_tile = _round_up(-(-tokens_per_expert // n_t), 16)
    if i_tile is None:
        i_tile = _pick_tile(expert_dim, i_pref, 128)
    assert tokens_tile % 8 == 0, "tokens_tile must be a multiple of 8"
    assert expert_dim % i_tile == 0, "i_tile must divide expert_dim"
    assert i_tile % 128 == 0, "expert_dim needs a 128-multiple divisor tile"
    num_i_tiles = expert_dim // i_tile

    # Pad the per-expert token dim up to a multiple of tokens_tile instead of
    # shrinking the tile to a divisor: zero rows produce zero outputs (SiLU(0)=0)
    # and are sliced off below, keeping the kernel at its designed tile size.
    padded_t = _round_up(tokens_per_expert, tokens_tile)
    num_t_tiles = padded_t // tokens_tile

    hs3 = hidden_states.reshape(num_experts, tokens_per_expert, hidden_size)
    if padded_t != tokens_per_expert:
        hs3 = jnp.pad(hs3, ((0, 0), (0, padded_t - tokens_per_expert), (0, 0)))

    # NOTE: no wrapper-side astype of weights/activations -- casts happen
    # per-tile inside the kernel, so f32 inputs never force a full-size HBM copy
    # every call.  Store the expert weights in bf16 at load time for the lean path.

    # Megacore: (experts x token_tiles) is the parallel space split across
    # TensorCores; with >=2 work items both v7x cores stay busy.
    grid = (num_experts, num_t_tiles, num_i_tiles)

    def build(sbuf_io):
        io_kwargs = {"pipeline_mode": pl.Buffered(1)} if sbuf_io else {}
        hs_spec = pl.BlockSpec((None, tokens_tile, hidden_size),
                               lambda e, t, i: (e, t, 0), **io_kwargs)
        gate_spec = pl.BlockSpec((None, hidden_size, i_tile),
                                 lambda e, t, i: (e, 0, i))
        # Up half lives in the second half of the last dim: block index offset
        # by num_i_tiles.
        up_spec = pl.BlockSpec((None, hidden_size, i_tile),
                               lambda e, t, i: (e, 0, i + num_i_tiles))
        down_spec = pl.BlockSpec((None, i_tile, hidden_size),
                                 lambda e, t, i: (e, i, 0))
        out_spec = pl.BlockSpec((None, tokens_tile, hidden_size),
                                lambda e, t, i: (e, t, 0), **io_kwargs)

        # Explicit scoped-VMEM budget from the actual buffered tile bytes,
        # capped at 0.85x the physical per-core VMEM of the running chip.
        hs_b = jnp.dtype(hidden_states.dtype).itemsize
        w_b = jnp.dtype(gate_up_proj.dtype).itemsize
        o_b = jnp.dtype(out_dtype).itemsize
        io_buf = 1 if sbuf_io else 2
        req = (io_buf * tokens_tile * hidden_size * hs_b          # hs tile(s)
               + 2 * 2 * hidden_size * i_tile * w_b               # gate + up, double buffered
               + 2 * i_tile * hidden_size * w_b                   # down, double buffered
               + io_buf * tokens_tile * hidden_size * o_b         # out tile(s)
               + tokens_tile * hidden_size * 4                    # f32 accumulator scratch
               + 3 * tokens_tile * i_tile * 4)                    # f32 gate/up/inter temps
        cap = int(0.85 * _vmem_capacity_bytes())
        vmem_limit = min(max(int(req * 1.25) + (4 << 20), 32 << 20), cap)

        return pl.pallas_call(
            functools.partial(_experts_kernel, compute_dtype=compute_dtype),
            out_shape=jax.ShapeDtypeStruct(
                (num_experts, padded_t, hidden_size), out_dtype),
            grid_spec=pltpu.PrefetchScalarGridSpec(
                num_scalar_prefetch=0,
                grid=grid,
                in_specs=[hs_spec, gate_spec, up_spec, down_spec],
                out_specs=out_spec,
                scratch_shapes=[pltpu.VMEM((tokens_tile, hidden_size), jnp.float32)],
            ),
            compiler_params=pltpu.CompilerParams(
                dimension_semantics=("parallel", "parallel", "arbitrary"),
                vmem_limit_bytes=vmem_limit,
            ),
        )

    # gate_up_proj is passed twice: once through the gate-half spec, once
    # through the up-half spec.
    if single_buffer_io:
        try:
            out = build(True)(hs3, gate_up_proj, gate_up_proj, down_proj)
        except Exception:
            # Fallback if this JAX build rejects Buffered(1) on the main pipeline.
            out = build(False)(hs3, gate_up_proj, gate_up_proj, down_proj)
    else:
        out = build(False)(hs3, gate_up_proj, gate_up_proj, down_proj)

    out = out[:, :tokens_per_expert, :]
    return out.reshape(-1, hidden_size)


def _reference(hidden_states, gate_up_proj, down_proj, compute_dtype=jnp.bfloat16):
    """Pure-JAX mirror of the kernel math (bf16 operands, f32 accumulation)."""
    num_experts, hidden_size, two_i = gate_up_proj.shape
    expert_dim = two_i // 2
    hs = hidden_states.reshape(num_experts, -1, hidden_size).astype(compute_dtype)
    gup = gate_up_proj.astype(compute_dtype)
    dwn = down_proj.astype(compute_dtype)
    gate_up = jnp.einsum("eth,ehf->etf", hs, gup,
                         preferred_element_type=jnp.float32)
    gate, up = gate_up[..., :expert_dim], gate_up[..., expert_dim:]
    inter = (up * (gate * jax.nn.sigmoid(gate))).astype(compute_dtype)
    out = jnp.einsum("eti,eih->eth", inter, dwn,
                     preferred_element_type=jnp.float32)
    return out.reshape(-1, hidden_size).astype(hidden_states.dtype)


if __name__ == "__main__":
    # Small config: num_local_experts=2, hidden_size=128, intermediate_size=256.
    # tokens_per_expert=20 is deliberately NOT a power-of-two multiple so the
    # token-padding path is exercised.  hidden_states: (40, 128).
    num_experts = 2
    hidden_size = 128
    expert_dim = 256        # intermediate_size
    tokens_per_expert = 20

    key = jax.random.PRNGKey(0)
    k1, k2, k3 = jax.random.split(key, 3)
    hidden_states = jax.random.normal(
        k1, (num_experts * tokens_per_expert, hidden_size)).astype(jnp.bfloat16)
    gate_up_proj = (0.05 * jax.random.normal(
        k2, (num_experts, hidden_size, 2 * expert_dim))).astype(jnp.bfloat16)
    down_proj = (0.05 * jax.random.normal(
        k3, (num_experts, expert_dim, hidden_size))).astype(jnp.bfloat16)

    ref = _reference(hidden_states, gate_up_proj, down_proj)

    # 1) Explicit small tiles: exercises every grid axis (2 experts x 2 token
    #    tiles x 2 I-tiles), the accumulator init/finalize path and token padding.
    out_a = llama4_text_experts(hidden_states, gate_up_proj, down_proj,
                                tokens_tile=16, i_tile=128)
    out_a = jax.block_until_ready(out_a)
    assert out_a.shape == (num_experts * tokens_per_expert, hidden_size)
    assert out_a.dtype == hidden_states.dtype
    assert jnp.allclose(out_a.astype(jnp.float32), ref.astype(jnp.float32),
                        atol=2e-2, rtol=2e-2), "mismatch vs reference (explicit tiles)"

    # 2) Generation-dependent default tiles (the production path).
    out_b = llama4_text_experts(hidden_states, gate_up_proj, down_proj)
    out_b = jax.block_until_ready(out_b)
    assert out_b.shape == (num_experts * tokens_per_expert, hidden_size)
    assert jnp.allclose(out_b.astype(jnp.float32), ref.astype(jnp.float32),
                        atol=2e-2, rtol=2e-2), "mismatch vs reference (default tiles)"

    print("KERNEL_OK")
</pallas_src>

<mosaic_0001>
module attributes {stable_mosaic.version = 11 : i64} {
  func.func @_experts_kernel(%arg0: i32, %arg1: i32, %arg2: i32, %arg3: memref<1x16x128xbf16, #tpu.memory_space<vmem>>, %arg4: memref<1x128x128xbf16, #tpu.memory_space<vmem>>, %arg5: memref<1x128x128xbf16, #tpu.memory_space<vmem>>, %arg6: memref<1x128x128xbf16, #tpu.memory_space<vmem>>, %arg7: memref<1x16x128xbf16, #tpu.memory_space<vmem>>, %arg8: memref<16x128xf32, #tpu.memory_space<vmem>>) attributes {dimension_semantics = [#tpu.dimension_semantics<parallel>, #tpu.dimension_semantics<parallel>, #tpu.dimension_semantics<arbitrary>], iteration_bounds = array<i64: 2, 2, 2>, scalar_prefetch = 0 : i64, scratch_operands = 1 : i64, tpu.core_type = #tpu.core_type<tc>, window_params = [{pipeline_mode = #tpu.pipeline_mode<synchronous>, transform_indices = @transform_0, window_bounds = array<i64: 1, 16, 128>}, {transform_indices = @transform_1, window_bounds = array<i64: 1, 128, 128>}, {transform_indices = @transform_2, window_bounds = array<i64: 1, 128, 128>}, {transform_indices = @transform_3, window_bounds = array<i64: 1, 128, 128>}, {pipeline_mode = #tpu.pipeline_mode<synchronous>, transform_indices = @transform_4, window_bounds = array<i64: 1, 16, 128>}]} {
    %c0_i32 = arith.constant 0 : i32
    %0 = arith.cmpi eq, %arg2, %c0_i32 : i32
    %1 = arith.extui %0 : i1 to i32
    %c0_i32_0 = arith.constant 0 : i32
    %2 = arith.cmpi ne, %1, %c0_i32_0 : i32
    scf.if %2 {
      %cst_20 = arith.constant 0.000000e+00 : f32
      %28 = vector.broadcast %cst_20 : f32 to vector<16x128xf32>
      %c0_21 = arith.constant 0 : index
      %c0_22 = arith.constant 0 : index
      %29 = vector.load %arg8[%c0_21, %c0_22] : memref<16x128xf32, #tpu.memory_space<vmem>>, vector<16x128xf32>
      tpu.vector_store %arg8[%c0_21, %c0_22], %28 {strides = array<i32>} : memref<16x128xf32, #tpu.memory_space<vmem>>, vector<16x128xf32>,
    } else {
    }
    %c0 = arith.constant 0 : index
    %c0_1 = arith.constant 0 : index
    %c0_2 = arith.constant 0 : index
    %3 = vector.load %arg3[%c0, %c0_1, %c0_2] : memref<1x16x128xbf16, #tpu.memory_space<vmem>>, vector<1x16x128xbf16>
    %4 = vector.shape_cast %3 : vector<1x16x128xbf16> to vector<16x128xbf16>
    %c0_3 = arith.constant 0 : index
    %c0_4 = arith.constant 0 : index
    %c0_5 = arith.constant 0 : index
    %5 = vector.load %arg4[%c0_3, %c0_4, %c0_5] : memref<1x128x128xbf16, #tpu.memory_space<vmem>>, vector<1x128x128xbf16>
    %6 = vector.shape_cast %5 : vector<1x128x128xbf16> to vector<128x128xbf16>
    %c0_6 = arith.constant 0 : index
    %c0_7 = arith.constant 0 : index
    %c0_8 = arith.constant 0 : index
    %7 = vector.load %arg5[%c0_6, %c0_7, %c0_8] : memref<1x128x128xbf16, #tpu.memory_space<vmem>>, vector<1x128x128xbf16>
    %8 = vector.shape_cast %7 : vector<1x128x128xbf16> to vector<128x128xbf16>
    %c0_9 = arith.constant 0 : index
    %c0_10 = arith.constant 0 : index
    %c0_11 = arith.constant 0 : index
    %9 = vector.load %arg6[%c0_9, %c0_10, %c0_11] : memref<1x128x128xbf16, #tpu.memory_space<vmem>>, vector<1x128x128xbf16>
    %10 = vector.shape_cast %9 : vector<1x128x128xbf16> to vector<128x128xbf16>
    %cst = arith.constant dense<0.000000e+00> : vector<16x128xf32>
    %11 = tpu.matmul %4, %6, %cst {dimension_numbers = #tpu.dot_dimension_numbers<[1], [0], [0], [1], [0, 0, 1, 1], [], []>} : vector<16x128xbf16>, vector<128x128xbf16>, vector<16x128xf32> -> vector<16x128xf32>
    %cst_12 = arith.constant dense<0.000000e+00> : vector<16x128xf32>
    %12 = tpu.matmul %4, %8, %cst_12 {dimension_numbers = #tpu.dot_dimension_numbers<[1], [0], [0], [1], [0, 0, 1, 1], [], []>} : vector<16x128xbf16>, vector<128x128xbf16>, vector<16x128xf32> -> vector<16x128xf32>
    %13 = arith.negf %11 : vector<16x128xf32>
    %14 = math.exp %13 : vector<16x128xf32>
    %cst_13 = arith.constant 1.000000e+00 : f32
    %15 = vector.broadcast %cst_13 : f32 to vector<16x128xf32>
    %16 = arith.addf %15, %14 : vector<16x128xf32>
    %17 = arith.divf %15, %16 : vector<16x128xf32>
    %18 = arith.mulf %11, %17 : vector<16x128xf32>
    %19 = arith.mulf %12, %18 : vector<16x128xf32>
    %c0_14 = arith.constant 0 : index
    %c0_15 = arith.constant 0 : index
    %20 = vector.load %arg8[%c0_14, %c0_15] : memref<16x128xf32, #tpu.memory_space<vmem>>, vector<16x128xf32>
    %21 = arith.truncf %19 : vector<16x128xf32> to vector<16x128xbf16>
    %cst_16 = arith.constant dense<0.000000e+00> : vector<16x128xf32>
    %22 = tpu.matmul %21, %10, %cst_16 {dimension_numbers = #tpu.dot_dimension_numbers<[1], [0], [0], [1], [0, 0, 1, 1], [], []>} : vector<16x128xbf16>, vector<128x128xbf16>, vector<16x128xf32> -> vector<16x128xf32>
    %23 = arith.addf %20, %22 : vector<16x128xf32>
    %c0_17 = arith.constant 0 : index
    %c0_18 = arith.constant 0 : index
    %24 = vector.load %arg8[%c0_17, %c0_18] : memref<16x128xf32, #tpu.memory_space<vmem>>, vector<16x128xf32>
    tpu.vector_store %arg8[%c0_17, %c0_18], %23 {strides = array<i32>} : memref<16x128xf32, #tpu.memory_space<vmem>>, vector<16x128xf32>,
    %c1_i32 = arith.constant 1 : i32
    %25 = arith.cmpi eq, %arg2, %c1_i32 : i32
    %26 = arith.extui %25 : i1 to i32
    %c0_i32_19 = arith.constant 0 : i32
    %27 = arith.cmpi ne, %26, %c0_i32_19 : i32
    scf.if %27 {
      %c0_20 = arith.constant 0 : index
      %c0_21 = arith.constant 0 : index
      %28 = vector.load %arg8[%c0_20, %c0_21] : memref<16x128xf32, #tpu.memory_space<vmem>>, vector<16x128xf32>
      %29 = arith.truncf %28 : vector<16x128xf32> to vector<16x128xbf16>
      %c0_22 = arith.constant 0 : index
      %c0_23 = arith.constant 0 : index
      %c0_24 = arith.constant 0 : index
      %30 = vector.load %arg7[%c0_22, %c0_23, %c0_24] : memref<1x16x128xbf16, #tpu.memory_space<vmem>>, vector<1x16x128xbf16>
      %31 = vector.shape_cast %30 : vector<1x16x128xbf16> to vector<16x128xbf16>
      %32 = vector.shape_cast %29 : vector<16x128xbf16> to vector<1x16x128xbf16>
      tpu.vector_store %arg7[%c0_22, %c0_23, %c0_24], %32 {strides = array<i32>} : memref<1x16x128xbf16, #tpu.memory_space<vmem>>, vector<1x16x128xbf16>,
    } else {
    }
    return
  }
  func.func @transform_0(%arg0: i32, %arg1: i32, %arg2: i32) -> (i32, i32, i32) {
    %c0_i32 = arith.constant 0 : i32
    %c0_i32_0 = arith.constant 0 : i32
    return %arg0, %arg1, %c0_i32 : i32, i32, i32
  }
  func.func @transform_1(%arg0: i32, %arg1: i32, %arg2: i32) -> (i32, i32, i32) {
    %c0_i32 = arith.constant 0 : i32
    %c0_i32_0 = arith.constant 0 : i32
    return %arg0, %c0_i32, %arg2 : i32, i32, i32
  }
  func.func @transform_2(%arg0: i32, %arg1: i32, %arg2: i32) -> (i32, i32, i32) {
    %c2_i32 = arith.constant 2 : i32
    %0 = arith.addi %arg2, %c2_i32 : i32
    %c0_i32 = arith.constant 0 : i32
    %c0_i32_0 = arith.constant 0 : i32
    return %arg0, %c0_i32, %0 : i32, i32, i32
  }
  func.func @transform_3(%arg0: i32, %arg1: i32, %arg2: i32) -> (i32, i32, i32) {
    %c0_i32 = arith.constant 0 : i32
    %c0_i32_0 = arith.constant 0 : i32
    return %arg0, %arg2, %c0_i32 : i32, i32, i32
  }
  func.func @transform_4(%arg0: i32, %arg1: i32, %arg2: i32) -> (i32, i32, i32) {
    %c0_i32 = arith.constant 0 : i32
    %c0_i32_0 = arith.constant 0 : i32
    return %arg0, %arg1, %c0_i32 : i32, i32, i32
  }
}

module attributes {stable_mosaic.version = 11 : i64} {
  func.func @_experts_kernel(%arg0: i32, %arg1: i32, %arg2: i32, %arg3: memref<1x16x128xbf16, #tpu.memory_space<vmem>>, %arg4: memref<1x128x128xbf16, #tpu.memory_space<vmem>>, %arg5: memref<1x128x128xbf16, #tpu.memory_space<vmem>>, %arg6: memref<1x128x128xbf16, #tpu.memory_space<vmem>>, %arg7: memref<1x16x128xbf16, #tpu.memory_space<vmem>>, %arg8: memref<16x128xf32, #tpu.memory_space<vmem>>) attributes {dimension_semantics = [#tpu.dimension_semantics<parallel>, #tpu.dimension_semantics<parallel>, #tpu.dimension_semantics<arbitrary>], iteration_bounds = array<i64: 2, 2, 2>, scalar_prefetch = 0 : i64, scratch_operands = 1 : i64, tpu.core_type = #tpu.core_type<tc>, window_params = [{transform_indices = @transform_0, window_bounds = array<i64: 1, 16, 128>}, {transform_indices = @transform_1, window_bounds = array<i64: 1, 128, 128>}, {transform_indices = @transform_2, window_bounds = array<i64: 1, 128, 128>}, {transform_indices = @transform_3, window_bounds = array<i64: 1, 128, 128>}, {transform_indices = @transform_4, window_bounds = array<i64: 1, 16, 128>}]} {
    %c0_i32 = arith.constant 0 : i32
    %0 = arith.cmpi eq, %arg2, %c0_i32 : i32
    %1 = arith.extui %0 : i1 to i32
    %c0_i32_0 = arith.constant 0 : i32
    %2 = arith.cmpi ne, %1, %c0_i32_0 : i32
    scf.if %2 {
      %cst_20 = arith.constant 0.000000e+00 : f32
      %28 = vector.broadcast %cst_20 : f32 to vector<16x128xf32>
      %c0_21 = arith.constant 0 : index
      %c0_22 = arith.constant 0 : index
      %29 = vector.load %arg8[%c0_21, %c0_22] : memref<16x128xf32, #tpu.memory_space<vmem>>, vector<16x128xf32>
      tpu.vector_store %arg8[%c0_21, %c0_22], %28 {strides = array<i32>} : memref<16x128xf32, #tpu.memory_space<vmem>>, vector<16x128xf32>,
    } else {
    }
    %c0 = arith.constant 0 : index
    %c0_1 = arith.constant 0 : index
    %c0_2 = arith.constant 0 : index
    %3 = vector.load %arg3[%c0, %c0_1, %c0_2] : memref<1x16x128xbf16, #tpu.memory_space<vmem>>, vector<1x16x128xbf16>
    %4 = vector.shape_cast %3 : vector<1x16x128xbf16> to vector<16x128xbf16>
    %c0_3 = arith.constant 0 : index
    %c0_4 = arith.constant 0 : index
    %c0_5 = arith.constant 0 : index
    %5 = vector.load %arg4[%c0_3, %c0_4, %c0_5] : memref<1x128x128xbf16, #tpu.memory_space<vmem>>, vector<1x128x128xbf16>
    %6 = vector.shape_cast %5 : vector<1x128x128xbf16> to vector<128x128xbf16>
    %c0_6 = arith.constant 0 : index
    %c0_7 = arith.constant 0 : index
    %c0_8 = arith.constant 0 : index
    %7 = vector.load %arg5[%c0_6, %c0_7, %c0_8] : memref<1x128x128xbf16, #tpu.memory_space<vmem>>, vector<1x128x128xbf16>
    %8 = vector.shape_cast %7 : vector<1x128x128xbf16> to vector<128x128xbf16>
    %c0_9 = arith.constant 0 : index
    %c0_10 = arith.constant 0 : index
    %c0_11 = arith.constant 0 : index
    %9 = vector.load %arg6[%c0_9, %c0_10, %c0_11] : memref<1x128x128xbf16, #tpu.memory_space<vmem>>, vector<1x128x128xbf16>
    %10 = vector.shape_cast %9 : vector<1x128x128xbf16> to vector<128x128xbf16>
    %cst = arith.constant dense<0.000000e+00> : vector<16x128xf32>
    %11 = tpu.matmul %4, %6, %cst {dimension_numbers = #tpu.dot_dimension_numbers<[1], [0], [0], [1], [0, 0, 1, 1], [], []>} : vector<16x128xbf16>, vector<128x128xbf16>, vector<16x128xf32> -> vector<16x128xf32>
    %cst_12 = arith.constant dense<0.000000e+00> : vector<16x128xf32>
    %12 = tpu.matmul %4, %8, %cst_12 {dimension_numbers = #tpu.dot_dimension_numbers<[1], [0], [0], [1], [0, 0, 1, 1], [], []>} : vector<16x128xbf16>, vector<128x128xbf16>, vector<16x128xf32> -> vector<16x128xf32>
    %13 = arith.negf %11 : vector<16x128xf32>
    %14 = math.exp %13 : vector<16x128xf32>
    %cst_13 = arith.constant 1.000000e+00 : f32
    %15 = vector.broadcast %cst_13 : f32 to vector<16x128xf32>
    %16 = arith.addf %15, %14 : vector<16x128xf32>
    %17 = arith.divf %15, %16 : vector<16x128xf32>
    %18 = arith.mulf %11, %17 : vector<16x128xf32>
    %19 = arith.mulf %12, %18 : vector<16x128xf32>
    %c0_14 = arith.constant 0 : index
    %c0_15 = arith.constant 0 : index
    %20 = vector.load %arg8[%c0_14, %c0_15] : memref<16x128xf32, #tpu.memory_space<vmem>>, vector<16x128xf32>
    %21 = arith.truncf %19 : vector<16x128xf32> to vector<16x128xbf16>
    %cst_16 = arith.constant dense<0.000000e+00> : vector<16x128xf32>
    %22 = tpu.matmul %21, %10, %cst_16 {dimension_numbers = #tpu.dot_dimension_numbers<[1], [0], [0], [1], [0, 0, 1, 1], [], []>} : vector<16x128xbf16>, vector<128x128xbf16>, vector<16x128xf32> -> vector<16x128xf32>
    %23 = arith.addf %20, %22 : vector<16x128xf32>
    %c0_17 = arith.constant 0 : index
    %c0_18 = arith.constant 0 : index
    %24 = vector.load %arg8[%c0_17, %c0_18] : memref<16x128xf32, #tpu.memory_space<vmem>>, vector<16x128xf32>
    tpu.vector_store %arg8[%c0_17, %c0_18], %23 {strides = array<i32>} : memref<16x128xf32, #tpu.memory_space<vmem>>, vector<16x128xf32>,
    %c1_i32 = arith.constant 1 : i32
    %25 = arith.cmpi eq, %arg2, %c1_i32 : i32
    %26 = arith.extui %25 : i1 to i32
    %c0_i32_19 = arith.constant 0 : i32
    %27 = arith.cmpi ne, %26, %c0_i32_19 : i32
    scf.if %27 {
      %c0_20 = arith.constant 0 : index
      %c0_21 = arith.constant 0 : index
      %28 = vector.load %arg8[%c0_20, %c0_21] : memref<16x128xf32, #tpu.memory_space<vmem>>, vector<16x128xf32>
      %29 = arith.truncf %28 : vector<16x128xf32> to vector<16x128xbf16>
      %c0_22 = arith.constant 0 : index
      %c0_23 = arith.constant 0 : index
      %c0_24 = arith.constant 0 : index
      %30 = vector.load %arg7[%c0_22, %c0_23, %c0_24] : memref<1x16x128xbf16, #tpu.memory_space<vmem>>, vector<1x16x128xbf16>
      %31 = vector.shape_cast %30 : vector<1x16x128xbf16> to vector<16x128xbf16>
      %32 = vector.shape_cast %29 : vector<16x128xbf16> to vector<1x16x128xbf16>
      tpu.vector_store %arg7[%c0_22, %c0_23, %c0_24], %32 {strides = array<i32>} : memref<1x16x128xbf16, #tpu.memory_space<vmem>>, vector<1x16x128xbf16>,
    } else {
    }
    return
  }
  func.func @transform_0(%arg0: i32, %arg1: i32, %arg2: i32) -> (i32, i32, i32) {
    %c0_i32 = arith.constant 0 : i32
    %c0_i32_0 = arith.constant 0 : i32
    return %arg0, %arg1, %c0_i32 : i32, i32, i32
  }
  func.func @transform_1(%arg0: i32, %arg1: i32, %arg2: i32) -> (i32, i32, i32) {
    %c0_i32 = arith.constant 0 : i32
    %c0_i32_0 = arith.constant 0 : i32
    return %arg0, %c0_i32, %arg2 : i32, i32, i32
  }
  func.func @transform_2(%arg0: i32, %arg1: i32, %arg2: i32) -> (i32, i32, i32) {
    %c2_i32 = arith.constant 2 : i32
    %0 = arith.addi %arg2, %c2_i32 : i32
    %c0_i32 = arith.constant 0 : i32
    %c0_i32_0 = arith.constant 0 : i32
    return %arg0, %c0_i32, %0 : i32, i32, i32
  }
  func.func @transform_3(%arg0: i32, %arg1: i32, %arg2: i32) -> (i32, i32, i32) {
    %c0_i32 = arith.constant 0 : i32
    %c0_i32_0 = arith.constant 0 : i32
    return %arg0, %arg2, %c0_i32 : i32, i32, i32
  }
  func.func @transform_4(%arg0: i32, %arg1: i32, %arg2: i32) -> (i32, i32, i32) {
    %c0_i32 = arith.constant 0 : i32
    %c0_i32_0 = arith.constant 0 : i32
    return %arg0, %arg1, %c0_i32 : i32, i32, i32
  }
}

</mosaic_0001>

<llo_original>
// kernel: tpu_custom_call.1
$region0: #{tpu_custom_call.1}
  #allocation0 [shape = 'u32[]', space=smem, size = 0x4, offset = 0x4, fixed_abs, tag = 'smem constant byte address 0x4 - core index']
  #allocation1 [shape = 'u32[144,128]{1,0:T(1,128)}', space=vmem, size = 0x12000, scoped, tag = 'internal scratch']
  #allocation2 [shape = 'f32[16,128]{1,0:T(8,128)}', space=vmem, size = 0x2000, scoped, tag = 'scratch operand']
  %s0 = inlined_call_operand.hbm [shape: bf16[2,32,128], index: 0, kind: input, shape index: {}]
  %s1 = inlined_call_operand.hbm [shape: bf16[2,128,512], index: 1, kind: input, shape index: {}]
  %s2 = inlined_call_operand.hbm [shape: bf16[2,128,512], index: 2, kind: input, shape index: {}]
  %s3 = inlined_call_operand.hbm [shape: bf16[2,256,128], index: 3, kind: input, shape index: {}]
  %s4 = inlined_call_operand.hbm [shape: bf16[2,32,128], index: 4, kind: output, shape index: {}]
  %s5 = sld [smem:[#allocation0]]
  $region73: #{tpu_custom_call.1} parent=0
    _
  %s7 = ssub.s32 1, %s5
  %s8 = scalar_select 0, %s7, %s5
  $region1: #{tpu_custom_call.1} parent=0
    #allocation3 [shape = 'u8[4096]{0}', space=vmem, size = 0x1000, scoped, tag = 'input window, operand 0, single buffered']
    #allocation4 [shape = 's32[2]{0}', space=sflag, size = 0x8, scoped, tag = 'scoped memory for tpu_custom_call.1']
    #allocation5 [shape = 's32[2]{0}', space=sflag, size = 0x8, scoped, tag = 'scoped memory for tpu_custom_call.1']
    #allocation6 [shape = 'u8[65536]{0}', space=vmem, size = 0x10000, scoped, tag = 'input window, operand 1']
    #allocation7 [shape = 's32[2]{0}', space=sflag, size = 0x8, scoped, tag = 'scoped memory for tpu_custom_call.1']
    #allocation8 [shape = 'u8[65536]{0}', space=vmem, size = 0x10000, scoped, tag = 'input window, operand 2']
    #allocation9 [shape = 'u8[65536]{0}', space=vmem, size = 0x10000, scoped, tag = 'input window, operand 3']
    #allocation10 [shape = 's32[2]{0}', space=sflag, size = 0x8, scoped, tag = 'scoped memory for tpu_custom_call.1']
    #allocation11 [shape = 'u8[4096]{0}', space=vmem, size = 0x1000, scoped, tag = 'output window, operand 0, single buffered']
    %9 = vsyncpa [#allocation4], 0
    %10 = vsyncpa [#allocation7], 0
    %s11 = scalar_lea.sflag [#allocation7], 1
    %12 = vsyncpa %s11, 0
    %13 = vsyncpa [#allocation10], 0
    %s14 = scalar_lea.sflag [#allocation10], 1
    %15 = vsyncpa %s14, 0
    %16 = vsyncpa [#allocation5], 0
    loop: start=0, step=1, limit=10
    $region2: #{tpu_custom_call.1} parent=1 // loop_pre_header
      _
    $region3: #{tpu_custom_call.1} parent=1 // loop_header
      %s18 = sphi 0, %s22
      %p19 = scmp.ge.s32.totalorder %s18, 10
      %s25 = sphi 0, %s44
      %s26 = sphi 0, %s40
      %s27 = sphi 0, %s36
      %s28 = sphi 0, %s25
      %s29 = sphi 0, %s26
      %s30 = sphi 0, %s27
      %s31 = sphi 0, %s28
      %s32 = sphi 0, %s29
      %s33 = sphi 0, %s30
      %s49 = sphi 0, %s51
      %s52 = sphi 0, %s49
      %s53 = sphi 0, %s52
      %s69 = sphi 0, %s53
      %s77 = sphi 0, %s79
      %s80 = sphi 0, %s77
      %s81 = sphi 0, %s80
      %s97 = sphi 0, %s81
      %s107 = sphi 0, %s109
      %s110 = sphi 0, %s107
      %s111 = sphi 0, %s110
      %s127 = sphi 0, %s111
      %s135 = sphi 0, %s137
      %s138 = sphi 0, %s135
      %s139 = sphi 0, %s138
      %s155 = sphi 0, %s139
      %s163 = sphi 0, %s165
      %s166 = sphi 0, %s163
      %s167 = sphi 0, %s166
      %s183 = sphi 0, %s167
    $region4: #{tpu_custom_call.1} parent=1 // loop_header_branch
      %21 = sbr.rel (%p19) target = $region8
    $region5: #{tpu_custom_call.1} parent=1 // loop_body
      %s23 = ssub.s32 %s18, 1
      %s24 = ssub.s32 %s18, 2
      %s34 = sadd.s32 1, %s27
      %p35 = scmp.ge.s32.totalorder %s34, 2
      %s36 = scalar_select %p35, 0, %s34
      %s37 = sadd.s32 1, %s26
      %s38 = scalar_select %p35, %s37, %s26
      %p39 = scmp.ge.s32.totalorder %s38, 2
      %s40 = scalar_select %p39, 0, %s38
      %s41 = sadd.s32 1, %s25
      %s42 = scalar_select %p39, %s41, %s25
      %p43 = scmp.ge.s32.totalorder %s42, 2
      %s44 = scalar_select %p43, 0, %s42
      %s45 = ssub.s32 %s25, %s44
      %s46 = ssub.s32 %s26, %s40
      %s47 = sor.u32 %s45, %s46
      %p48 = scmp.eq.s32.totalorder %s47, 0
      %s50 = sadd.s32 %s49, 1
      %s51 = scalar_select %p48, %s49, %s50
      %p54 = pneg %p48
      %p55 = scmp.eq.s32.totalorder %s18, 7
      %p56 = por %p54, %p55
      %p57 = scmp.ne.s32.totalorder %s49, %s52
      %p58 = scmp.eq.s32.totalorder %s18, 0
      %p59 = por %p57, %p58
      %p60 = scmp.ne.s32.totalorder %s49, %s52
      %p61 = scmp.eq.s32.totalorder %s23, 7
      %p62 = por %p60, %p61
      %p63 = scmp.ne.s32.totalorder %s52, %s53
      %p64 = scmp.eq.s32.totalorder %s23, 0
      %p65 = por %p63, %p64
      %p66 = scmp.ne.s32.totalorder %s52, %s53
      %p67 = scmp.eq.s32.totalorder %s24, 7
      %p68 = por %p66, %p67
      %p70 = scmp.ne.s32.totalorder %s53, %s69
      %p71 = scmp.eq.s32.totalorder %s24, 0
      %p72 = por %p70, %p71
      %s73 = ssub.s32 %s25, %s44
      %s74 = ssub.s32 %s27, %s36
      %s75 = sor.u32 %s73, %s74
      %p76 = scmp.eq.s32.totalorder %s75, 0
      %s78 = sadd.s32 %s77, 1
      %s79 = scalar_select %p76, %s77, %s78
      %p82 = pneg %p76
      %p83 = scmp.eq.s32.totalorder %s18, 7
      %p84 = por %p82, %p83
      %p85 = scmp.ne.s32.totalorder %s77, %s80
      %p86 = scmp.eq.s32.totalorder %s18, 0
      %p87 = por %p85, %p86
      %p88 = scmp.ne.s32.totalorder %s77, %s80
      %p89 = scmp.eq.s32.totalorder %s23, 7
      %p90 = por %p88, %p89
      %p91 = scmp.ne.s32.totalorder %s80, %s81
      %p92 = scmp.eq.s32.totalorder %s23, 0
      %p93 = por %p91, %p92
      %p94 = scmp.ne.s32.totalorder %s80, %s81
      %p95 = scmp.eq.s32.totalorder %s24, 7
      %p96 = por %p94, %p95
      %p98 = scmp.ne.s32.totalorder %s81, %s97
      %p99 = scmp.eq.s32.totalorder %s24, 0
      %p100 = por %p98, %p99
      %s101 = sadd.s32 %s27, 2
      %s102 = sadd.s32 %s36, 2
      %s103 = ssub.s32 %s25, %s44
      %s104 = ssub.s32 %s101, %s102
      %s105 = sor.u32 %s103, %s104
      %p106 = scmp.eq.s32.totalorder %s105, 0
      %s108 = sadd.s32 %s107, 1
      %s109 = scalar_select %p106, %s107, %s108
      %p112 = pneg %p106
      %p113 = scmp.eq.s32.totalorder %s18, 7
      %p114 = por %p112, %p113
      %p115 = scmp.ne.s32.totalorder %s107, %s110
      %p116 = scmp.eq.s32.totalorder %s18, 0
      %p117 = por %p115, %p116
      %p118 = scmp.ne.s32.totalorder %s107, %s110
      %p119 = scmp.eq.s32.totalorder %s23, 7
      %p120 = por %p118, %p119
      %p121 = scmp.ne.s32.totalorder %s110, %s111
      %p122 = scmp.eq.s32.totalorder %s23, 0
      %p123 = por %p121, %p122
      %p124 = scmp.ne.s32.totalorder %s110, %s111
      %p125 = scmp.eq.s32.totalorder %s24, 7
      %p126 = por %p124, %p125
      %p128 = scmp.ne.s32.totalorder %s111, %s127
      %p129 = scmp.eq.s32.totalorder %s24, 0
      %p130 = por %p128, %p129
      %s131 = ssub.s32 %s25, %s44
      %s132 = ssub.s32 %s27, %s36
      %s133 = sor.u32 %s131, %s132
      %p134 = scmp.eq.s32.totalorder %s133, 0
      %s136 = sadd.s32 %s135, 1
      %s137 = scalar_select %p134, %s135, %s136
      %p140 = pneg %p134
      %p141 = scmp.eq.s32.totalorder %s18, 7
      %p142 = por %p140, %p141
      %p143 = scmp.ne.s32.totalorder %s135, %s138
      %p144 = scmp.eq.s32.totalorder %s18, 0
      %p145 = por %p143, %p144
      %p146 = scmp.ne.s32.totalorder %s135, %s138
      %p147 = scmp.eq.s32.totalorder %s23, 7
      %p148 = por %p146, %p147
      %p149 = scmp.ne.s32.totalorder %s138, %s139
      %p150 = scmp.eq.s32.totalorder %s23, 0
      %p151 = por %p149, %p150
      %p152 = scmp.ne.s32.totalorder %s138, %s139
      %p153 = scmp.eq.s32.totalorder %s24, 7
      %p154 = por %p152, %p153
      %p156 = scmp.ne.s32.totalorder %s139, %s155
      %p157 = scmp.eq.s32.totalorder %s24, 0
      %p158 = por %p156, %p157
      %s159 = ssub.s32 %s25, %s44
      %s160 = ssub.s32 %s26, %s40
      %s161 = sor.u32 %s159, %s160
      %p162 = scmp.eq.s32.totalorder %s161, 0
      %s164 = sadd.s32 %s163, 1
      %s165 = scalar_select %p162, %s163, %s164
      %p168 = pneg %p162
      %p169 = scmp.eq.s32.totalorder %s18, 7
      %p170 = por %p168, %p169
      %p171 = scmp.ne.s32.totalorder %s163, %s166
      %p172 = scmp.eq.s32.totalorder %s18, 0
      %p173 = por %p171, %p172
      %p174 = scmp.ne.s32.totalorder %s163, %s166
      %p175 = scmp.eq.s32.totalorder %s23, 7
      %p176 = por %p174, %p175
      %p177 = scmp.ne.s32.totalorder %s166, %s167
      %p178 = scmp.eq.s32.totalorder %s23, 0
      %p179 = por %p177, %p178
      %p180 = scmp.ne.s32.totalorder %s166, %s167
      %p181 = scmp.eq.s32.totalorder %s24, 7
      %p182 = por %p180, %p181
      %p184 = scmp.ne.s32.totalorder %s167, %s183
      %p185 = scmp.eq.s32.totalorder %s24, 0
      %p186 = por %p184, %p185
      %p187 = scmp.le.s32.totalorder 1, %s18
      %p188 = scmp.lt.s32.totalorder %s18, 9
      %p189 = pnand %p187, %p188
      %p190 = pneg %p189
      // Predicated region
      $region9: #{tpu_custom_call.1} parent=5 // pred_check
        _
      $region10: #{tpu_custom_call.1} parent=5 // pred_check_branch
        %192 = sbr.rel (%p189) target = $region12
      $region11: #{tpu_custom_call.1} parent=5 // pred_region
        %s193 = ssub.s32 %s18, 1
        // Predicated region
        $region13: #{tpu_custom_call.1} parent=11 // pred_check
          %p194 = pneg %p65
        $region14: #{tpu_custom_call.1} parent=11 // pred_check_branch
          %196 = sbr.rel (%p194) target = $region16
        $region15: #{tpu_custom_call.1} parent=11 // pred_region
          %s197 = smul.u32 2, %s29
          %s199 = ssub.s32 128, 128
          %200 = vsyncadd [#allocation4], %s199
          %s201 = smul.addr %s28, 4
          %s202 = sadd.s32 %s197, %s201
          %s203 = smul.addr %s202, 64
          %s204 = scalar_lea.hbm %s0, %s203
          %s205 = sshll.u32 [#allocation3], 4
          %s206 = int_to_ptr.vmem [resolvable:$true] %s205
          %211 = dma.hbm_to_vmem [thread:$0]  %s204, 128, %s206, [#allocation4], 64, 64, 4
        $region16: #{tpu_custom_call.1} parent=11 // pred_fallthru
          _
      $region12: #{tpu_custom_call.1} parent=5 // pred_fallthru
        _
      %p212 = scmp.lt.s32.totalorder %s18, 8
      // Predicated region
      $region17: #{tpu_custom_call.1} parent=5 // pred_check
        %p213 = pneg %p212
      $region18: #{tpu_custom_call.1} parent=5 // pred_check_branch
        %215 = sbr.rel (%p213) target = $region20
      $region19: #{tpu_custom_call.1} parent=5 // pred_region
        // Predicated region
        $region21: #{tpu_custom_call.1} parent=19 // pred_check
          %p216 = pneg %p87
        $region22: #{tpu_custom_call.1} parent=19 // pred_check_branch
          %218 = sbr.rel (%p216) target = $region24
        $region23: #{tpu_custom_call.1} parent=19 // pred_region
          %s219 = sand.u32 %s18, 1
          %s220 = scalar_lea.sflag [#allocation7], %s219
          %s221 = sand.u32 %s77, 1
          %s222 = smul.addr %s221, 64
          %s223 = scalar_lea.vmem [#allocation6], %s222
          %s225 = ssub.s32 1024, 1024
          %226 = vsyncadd %s220, %s225
          %s227 = smul.addr %s25, 64
          %s228 = sadd.s32 %s27, %s227
          %s229 = smul.addr %s228, 64
          %s230 = scalar_lea.hbm %s1, %s229
          %s231 = sshll.u32 %s223, 4
          %s232 = int_to_ptr.vmem [resolvable:$true] %s231
          %237 = dma.hbm_to_vmem [thread:$0]  %s230, 1024, %s232, %s220, 256, 64, 4
        $region24: #{tpu_custom_call.1} parent=19 // pred_fallthru
          _
        // Predicated region
        $region25: #{tpu_custom_call.1} parent=19 // pred_check
          %p238 = pneg %p117
        $region26: #{tpu_custom_call.1} parent=19 // pred_check_branch
          %240 = sbr.rel (%p238) target = $region28
        $region27: #{tpu_custom_call.1} parent=19 // pred_region
          %s241 = sand.u32 %s18, 1
          %s242 = scalar_lea.sflag [#allocation7], %s241
          %s243 = sand.u32 %s107, 1
          %s244 = smul.addr %s243, 64
          %s245 = scalar_lea.vmem [#allocation8], %s244
          %s246 = sadd.s32 %s27, 2
          %s248 = ssub.s32 1024, 1024
          %249 = vsyncadd %s242, %s248
          %s250 = smul.addr %s25, 64
          %s251 = sadd.s32 %s246, %s250
          %s252 = smul.addr %s251, 64
          %s253 = scalar_lea.hbm %s2, %s252
          %s254 = sshll.u32 %s245, 4
          %s255 = int_to_ptr.vmem [resolvable:$true] %s254
          %260 = dma.hbm_to_vmem [thread:$0]  %s253, 1024, %s255, %s242, 256, 64, 4
        $region28: #{tpu_custom_call.1} parent=19 // pred_fallthru
          _
        // Predicated region
        $region29: #{tpu_custom_call.1} parent=19 // pred_check
          %p261 = pneg %p145
        $region30: #{tpu_custom_call.1} parent=19 // pred_check_branch
          %263 = sbr.rel (%p261) target = $region32
        $region31: #{tpu_custom_call.1} parent=19 // pred_region
          %s264 = sand.u32 %s135, 1
          %s265 = scalar_lea.sflag [#allocation10], %s264
          %s266 = sand.u32 %s135, 1
          %s267 = smul.addr %s266, 64
          %s268 = scalar_lea.vmem [#allocation9], %s267
          %s269 = smul.u32 16, %s27
          %s271 = ssub.s32 1024, 1024
          %272 = vsyncadd %s265, %s271
          %s273 = smul.addr %s25, 32
          %s274 = sadd.s32 %s269, %s273
          %s275 = smul.addr %s274, 64
          %s276 = scalar_lea.hbm %s3, %s275
          %s277 = sshll.u32 %s268, 4
          %s278 = int_to_ptr.vmem [resolvable:$true] %s277
          %283 = dma.hbm_to_vmem [thread:$0]  %s276, 1024, %s278, %s265, 64, 64, 4
        $region32: #{tpu_custom_call.1} parent=19 // pred_fallthru
          _
      $region20: #{tpu_custom_call.1} parent=5 // pred_fallthru
        _
      %p284 = scmp.le.s32.totalorder 1, %s18
      %p285 = scmp.lt.s32.totalorder %s18, 9
      %p286 = pnand %p284, %p285
      %p287 = pneg %p286
      // Predicated region
      $region33: #{tpu_custom_call.1} parent=5 // pred_check
        _
      $region34: #{tpu_custom_call.1} parent=5 // pred_check_branch
        %289 = sbr.rel (%p286) target = $region36
      $region35: #{tpu_custom_call.1} parent=5 // pred_region
        %s290 = ssub.s32 %s18, 1
        // Predicated region
        $region37: #{tpu_custom_call.1} parent=35 // pred_check
          %p291 = pneg %p65
        $region38: #{tpu_custom_call.1} parent=35 // pred_check_branch
          %293 = sbr.rel (%p291) target = $region40
        $region39: #{tpu_custom_call.1} parent=35 // pred_region
          %294 = dma.done [#allocation4], 128
        $region40: #{tpu_custom_call.1} parent=35 // pred_fallthru
          _
        %s295 = sand.u32 %s23, 1
        %s296 = scalar_lea.sflag [#allocation7], %s295
        %s297 = sand.u32 %s80, 1
        %s298 = smul.addr %s297, 64
        %s299 = scalar_lea.vmem [#allocation6], %s298
        // Predicated region
        $region41: #{tpu_custom_call.1} parent=35 // pred_check
          %p300 = pneg %p93
        $region42: #{tpu_custom_call.1} parent=35 // pred_check_branch
          %302 = sbr.rel (%p300) target = $region44
        $region43: #{tpu_custom_call.1} parent=35 // pred_region
          %303 = dma.done %s296, 1024
        $region44: #{tpu_custom_call.1} parent=35 // pred_fallthru
          _
        %s304 = sand.u32 %s23, 1
        %s305 = scalar_lea.sflag [#allocation7], %s304
        %s306 = sand.u32 %s110, 1
        %s307 = smul.addr %s306, 64
        %s308 = scalar_lea.vmem [#allocation8], %s307
        // Predicated region
        $region45: #{tpu_custom_call.1} parent=35 // pred_check
          %p309 = pneg %p123
        $region46: #{tpu_custom_call.1} parent=35 // pred_check_branch
          %311 = sbr.rel (%p309) target = $region48
        $region47: #{tpu_custom_call.1} parent=35 // pred_region
          %312 = dma.done %s305, 1024
        $region48: #{tpu_custom_call.1} parent=35 // pred_fallthru
          _
        %s313 = sand.u32 %s138, 1
        %s314 = scalar_lea.sflag [#allocation10], %s313
        %s315 = sand.u32 %s138, 1
        %s316 = smul.addr %s315, 64
        %s317 = scalar_lea.vmem [#allocation9], %s316
        // Predicated region
        $region49: #{tpu_custom_call.1} parent=35 // pred_check
          %p318 = pneg %p151
        $region50: #{tpu_custom_call.1} parent=35 // pred_check_branch
          %320 = sbr.rel (%p318) target = $region52
        $region51: #{tpu_custom_call.1} parent=35 // pred_region
          %321 = dma.done %s314, 1024
        $region52: #{tpu_custom_call.1} parent=35 // pred_fallthru
          _
        %p322 = pneg %p65
        %p323 = pneg %p62
        %s324 = sand.u32 %s23, 1
        %s325 = scalar_lea.sflag [#allocation7], %s324
        %s326 = sand.u32 %s80, 1
        %s327 = smul.addr %s326, 64
        %s328 = scalar_lea.vmem [#allocation6], %s327
        %p329 = pneg %p93
        %p330 = pneg %p90
        %s331 = sand.u32 %s23, 1
        %s332 = scalar_lea.sflag [#allocation7], %s331
        %s333 = sand.u32 %s110, 1
        %s334 = smul.addr %s333, 64
        %s335 = scalar_lea.vmem [#allocation8], %s334
        %p336 = pneg %p123
        %p337 = pneg %p120
        %s338 = sand.u32 %s138, 1
        %s339 = scalar_lea.sflag [#allocation10], %s338
        %s340 = sand.u32 %s138, 1
        %s341 = smul.addr %s340, 64
        %s342 = scalar_lea.vmem [#allocation9], %s341
        %p343 = pneg %p151
        %p344 = pneg %p148
        %p345 = pneg %p179
        %p346 = pneg %p176
        %s347 = smul.u32 2, %s29
        %s348 = sadd.s32 %s30, 2
        %s349 = smul.u32 16, %s30
        %s350 = smul.u32 2, %s29
        %p352 = scmp.eq.s32.totalorder %s30, 0
        // Predicated region
        $region53: #{tpu_custom_call.1} parent=35 // pred_check
          %p353 = pneg %p352
        $region54: #{tpu_custom_call.1} parent=35 // pred_check_branch
          %355 = sbr.rel (%p353) target = $region56
        $region55: #{tpu_custom_call.1} parent=35 // pred_region
          %356 = vst [vmem:[#allocation2] sm:$0xff] 0.0
          %357 = vst [vmem:[#allocation2 + $0x8] sm:$0xff] 0.0
        $region56: #{tpu_custom_call.1} parent=35 // pred_fallthru
          _
        %v358 = vld [vmem:[#allocation3] sm:$0xf]
        %v359 = vld [vmem:[#allocation3 + $0x4] sm:$0xf]
        %v360 = vld [vmem:[%s299] sm:$0xf]
        %v361 = vld [vmem:[%s299 + $0x4] sm:$0xf]
        %v362 = vld [vmem:[%s299 + $0x8] sm:$0xf]
        %v363 = vld [vmem:[%s299 + $0xc] sm:$0xf]
        %v364 = vld [vmem:[%s299 + $0x10] sm:$0xf]
        %v365 = vld [vmem:[%s299 + $0x14] sm:$0xf]
        %v366 = vld [vmem:[%s299 + $0x18] sm:$0xf]
        %v367 = vld [vmem:[%s299 + $0x1c] sm:$0xf]
        %v368 = vld [vmem:[%s299 + $0x20] sm:$0xf]
        %v369 = vld [vmem:[%s299 + $0x24] sm:$0xf]
        %v370 = vld [vmem:[%s299 + $0x28] sm:$0xf]
        %v371 = vld [vmem:[%s299 + $0x2c] sm:$0xf]
        %v372 = vld [vmem:[%s299 + $0x30] sm:$0xf]
        %v373 = vld [vmem:[%s299 + $0x34] sm:$0xf]
        %v374 = vld [vmem:[%s299 + $0x38] sm:$0xf]
        %v375 = vld [vmem:[%s299 + $0x3c] sm:$0xf]
        %v376 = vld [vmem:[%s308] sm:$0xf]
        %v377 = vld [vmem:[%s308 + $0x4] sm:$0xf]
        %v378 = vld [vmem:[%s308 + $0x8] sm:$0xf]
        %v379 = vld [vmem:[%s308 + $0xc] sm:$0xf]
        %v380 = vld [vmem:[%s308 + $0x10] sm:$0xf]
        %v381 = vld [vmem:[%s308 + $0x14] sm:$0xf]
        %v382 = vld [vmem:[%s308 + $0x18] sm:$0xf]
        %v383 = vld [vmem:[%s308 + $0x1c] sm:$0xf]
        %v384 = vld [vmem:[%s308 + $0x20] sm:$0xf]
        %v385 = vld [vmem:[%s308 + $0x24] sm:$0xf]
        %v386 = vld [vmem:[%s308 + $0x28] sm:$0xf]
        %v387 = vld [vmem:[%s308 + $0x2c] sm:$0xf]
        %v388 = vld [vmem:[%s308 + $0x30] sm:$0xf]
        %v389 = vld [vmem:[%s308 + $0x34] sm:$0xf]
        %v390 = vld [vmem:[%s308 + $0x38] sm:$0xf]
        %v391 = vld [vmem:[%s308 + $0x3c] sm:$0xf]
        %v392 = vld [vmem:[%s317] sm:$0xf]
        %v393 = vld [vmem:[%s317 + $0x4] sm:$0xf]
        %v394 = vld [vmem:[%s317 + $0x8] sm:$0xf]
        %v395 = vld [vmem:[%s317 + $0xc] sm:$0xf]
        %v396 = vld [vmem:[%s317 + $0x10] sm:$0xf]
        %v397 = vld [vmem:[%s317 + $0x14] sm:$0xf]
        %v398 = vld [vmem:[%s317 + $0x18] sm:$0xf]
        %v399 = vld [vmem:[%s317 + $0x1c] sm:$0xf]
        %v400 = vld [vmem:[%s317 + $0x20] sm:$0xf]
        %v401 = vld [vmem:[%s317 + $0x24] sm:$0xf]
        %v402 = vld [vmem:[%s317 + $0x28] sm:$0xf]
        %v403 = vld [vmem:[%s317 + $0x2c] sm:$0xf]
        %v404 = vld [vmem:[%s317 + $0x30] sm:$0xf]
        %v405 = vld [vmem:[%s317 + $0x34] sm:$0xf]
        %v406 = vld [vmem:[%s317 + $0x38] sm:$0xf]
        %v407 = vld [vmem:[%s317 + $0x3c] sm:$0xf]
        %v410 = vunpack.c.l.b16 %v358
        %v411 = vunpack.c.l.b16 %v359
        %v412 = vpack.c.b16 %v411, %v410
        %v430 = vunpack.c.l.b16 %v360
        %v431 = vunpack.c.l.b16 %v361
        %v432 = vunpack.c.l.b16 %v362
        %v433 = vunpack.c.l.b16 %v363
        %v434 = vunpack.c.l.b16 %v364
        %v435 = vunpack.c.l.b16 %v365
        %v436 = vunpack.c.l.b16 %v366
        %v437 = vunpack.c.l.b16 %v367
        %v438 = vunpack.c.l.b16 %v368
        %v439 = vunpack.c.l.b16 %v369
        %v440 = vunpack.c.l.b16 %v370
        %v441 = vunpack.c.l.b16 %v371
        %v442 = vunpack.c.l.b16 %v372
        %v443 = vunpack.c.l.b16 %v373
        %v444 = vunpack.c.l.b16 %v374
        %v445 = vunpack.c.l.b16 %v375
        %v446 = vpack.c.b16 %v431, %v430
        %v447 = vpack.c.b16 %v433, %v432
        %v448 = vpack.c.b16 %v435, %v434
        %v449 = vpack.c.b16 %v437, %v436
        %v450 = vpack.c.b16 %v439, %v438
        %v451 = vpack.c.b16 %v441, %v440
        %v452 = vpack.c.b16 %v443, %v442
        %v453 = vpack.c.b16 %v445, %v444
        %462 = vmatprep.subr.bf16.mxu0 0
        %463 = vmatpush1.bf16.msra.mxu0 %v453
        %464 = vmatprep.subr.bf16.mxu0 0
        %465 = vmatpush1.bf16.msra.mxu0 %v452
        %466 = vmatprep.subr.bf16.mxu0 0
        %467 = vmatpush1.bf16.msra.mxu0 %v451
        %468 = vmatprep.subr.bf16.mxu0 0
        %469 = vmatpush1.bf16.msra.mxu0 %v450
        %470 = vmatprep.subr.bf16.mxu0 0
        %471 = vmatpush1.bf16.msra.mxu0 %v449
        %472 = vmatprep.subr.bf16.mxu0 0
        %473 = vmatpush1.bf16.msra.mxu0 %v448
        %474 = vmatprep.subr.bf16.mxu0 0
        %475 = vmatpush1.bf16.msra.mxu0 %v447
        %476 = vmatprep.subr.bf16.mxu0 0
        %477 = vmatpush1.bf16.msra.mxu0 %v446
        %478 = vmatprep.subr.bf16.mxu0 0
        %479 = vmatpush2.bf16.msra.mxu0 0
        %480 = vmatprep.subr.bf16.mxu0 0
        %481 = vmatpush2.bf16.msra.mxu0 0
        %482 = vmatprep.subr.bf16.mxu0 0
        %483 = vmatpush2.bf16.msra.mxu0 0
        %484 = vmatprep.subr.bf16.mxu0 0
        %485 = vmatpush2.bf16.msra.mxu0 0
        %486 = vmatprep.subr.bf16.mxu0 0
        %487 = vmatpush2.bf16.msra.mxu0 0
        %488 = vmatprep.subr.bf16.mxu0 0
        %489 = vmatpush2.bf16.msra.mxu0 0
        %490 = vmatprep.subr.bf16.mxu0 0
        %491 = vmatpush2.bf16.msra.mxu0 0
        %492 = vmatprep.subr.bf16.mxu0 0
        %493 = vmatpush2.bf16.msra.mxu0 0
        %494 = vmatprep.mubr.bf16.mxu0 0
        %495 = vmatmul.mubr.bf16.gmra.mxu0 %v412
        %v496 = vpop.f32.mrf.mxu0
        %v497 = vadd.f32 0.0, %v496
        %v498 = vpop.f32.mrf.mxu0
        %v499 = vpop.f32.mrf.mxu0
        %v500 = vadd.f32 0.0, %v499
        %v501 = vpop.f32.mrf.mxu0
        %502 = vdwg.mxu0
        %v519 = vunpack.c.l.b16 %v376
        %v520 = vunpack.c.l.b16 %v377
        %v521 = vunpack.c.l.b16 %v378
        %v522 = vunpack.c.l.b16 %v379
        %v523 = vunpack.c.l.b16 %v380
        %v524 = vunpack.c.l.b16 %v381
        %v525 = vunpack.c.l.b16 %v382
        %v526 = vunpack.c.l.b16 %v383
        %v527 = vunpack.c.l.b16 %v384
        %v528 = vunpack.c.l.b16 %v385
        %v529 = vunpack.c.l.b16 %v386
        %v530 = vunpack.c.l.b16 %v387
        %v531 = vunpack.c.l.b16 %v388
        %v532 = vunpack.c.l.b16 %v389
        %v533 = vunpack.c.l.b16 %v390
        %v534 = vunpack.c.l.b16 %v391
        %v535 = vpack.c.b16 %v520, %v519
        %v536 = vpack.c.b16 %v522, %v521
        %v537 = vpack.c.b16 %v524, %v523
        %v538 = vpack.c.b16 %v526, %v525
        %v539 = vpack.c.b16 %v528, %v527
        %v540 = vpack.c.b16 %v530, %v529
        %v541 = vpack.c.b16 %v532, %v531
        %v542 = vpack.c.b16 %v534, %v533
        %551 = vmatprep.subr.bf16.mxu0 0
        %552 = vmatpush1.bf16.msra.mxu0 %v542
        %553 = vmatprep.subr.bf16.mxu0 0
        %554 = vmatpush1.bf16.msra.mxu0 %v541
        %555 = vmatprep.subr.bf16.mxu0 0
        %556 = vmatpush1.bf16.msra.mxu0 %v540
        %557 = vmatprep.subr.bf16.mxu0 0
        %558 = vmatpush1.bf16.msra.mxu0 %v539
        %559 = vmatprep.subr.bf16.mxu0 0
        %560 = vmatpush1.bf16.msra.mxu0 %v538
        %561 = vmatprep.subr.bf16.mxu0 0
        %562 = vmatpush1.bf16.msra.mxu0 %v537
        %563 = vmatprep.subr.bf16.mxu0 0
        %564 = vmatpush1.bf16.msra.mxu0 %v536
        %565 = vmatprep.subr.bf16.mxu0 0
        %566 = vmatpush1.bf16.msra.mxu0 %v535
        %567 = vmatprep.subr.bf16.mxu0 0
        %568 = vmatpush2.bf16.msra.mxu0 0
        %569 = vmatprep.subr.bf16.mxu0 0
        %570 = vmatpush2.bf16.msra.mxu0 0
        %571 = vmatprep.subr.bf16.mxu0 0
        %572 = vmatpush2.bf16.msra.mxu0 0
        %573 = vmatprep.subr.bf16.mxu0 0
        %574 = vmatpush2.bf16.msra.mxu0 0
        %575 = vmatprep.subr.bf16.mxu0 0
        %576 = vmatpush2.bf16.msra.mxu0 0
        %577 = vmatprep.subr.bf16.mxu0 0
        %578 = vmatpush2.bf16.msra.mxu0 0
        %579 = vmatprep.subr.bf16.mxu0 0
        %580 = vmatpush2.bf16.msra.mxu0 0
        %581 = vmatprep.subr.bf16.mxu0 0
        %582 = vmatpush2.bf16.msra.mxu0 0
        %583 = vmatprep.mubr.bf16.mxu0 0
        %584 = vmatmul.mubr.bf16.gmra.mxu0 %v412
        %v585 = vpop.f32.mrf.mxu0
        %v586 = vadd.f32 0.0, %v585
        %v587 = vpop.f32.mrf.mxu0
        %v588 = vpop.f32.mrf.mxu0
        %v589 = vadd.f32 0.0, %v588
        %v590 = vpop.f32.mrf.mxu0
        %591 = vdwg.mxu0
        %v592 = vxor.u32 %v497, 2147483648
        %v593 = vxor.u32 %v500, 2147483648
        %v594 = vmul.f32 %v592, 1.442695
        %v595 = vpow.pop %v594
        %v596 = vmul.f32 %v593, 1.442695
        %v597 = vpow.pop %v596
        %v598 = vadd.f32 %v595, 1.0
        %v599 = vadd.f32 %v597, 1.0
        %v600 = vrcp.pop %v598
        %v601 = vmul.f32 1.0, %v600
        %v602 = vrcp.pop %v599
        %v603 = vmul.f32 1.0, %v602
        %v604 = vmul.f32 %v497, %v601
        %v605 = vmul.f32 %v500, %v603
        %v606 = vmul.f32 %v586, %v604
        %v607 = vmul.f32 %v589, %v605
        %v608 = vld [vmem:[#allocation2] sm:$0xff]
        %v609 = vld [vmem:[#allocation2 + $0x8] sm:$0xff]
        %v610 = vpack.c.bf16 %v607, %v606
        %v627 = vunpack.c.l.b16 %v392
        %v628 = vunpack.c.l.b16 %v393
        %v629 = vunpack.c.l.b16 %v394
        %v630 = vunpack.c.l.b16 %v395
        %v631 = vunpack.c.l.b16 %v396
        %v632 = vunpack.c.l.b16 %v397
        %v633 = vunpack.c.l.b16 %v398
        %v634 = vunpack.c.l.b16 %v399
        %v635 = vunpack.c.l.b16 %v400
        %v636 = vunpack.c.l.b16 %v401
        %v637 = vunpack.c.l.b16 %v402
        %v638 = vunpack.c.l.b16 %v403
        %v639 = vunpack.c.l.b16 %v404
        %v640 = vunpack.c.l.b16 %v405
        %v641 = vunpack.c.l.b16 %v406
        %v642 = vunpack.c.l.b16 %v407
        %v643 = vpack.c.b16 %v628, %v627
        %v644 = vpack.c.b16 %v630, %v629
        %v645 = vpack.c.b16 %v632, %v631
        %v646 = vpack.c.b16 %v634, %v633
        %v647 = vpack.c.b16 %v636, %v635
        %v648 = vpack.c.b16 %v638, %v637
        %v649 = vpack.c.b16 %v640, %v639
        %v650 = vpack.c.b16 %v642, %v641
        %659 = vmatprep.subr.bf16.mxu0 0
        %660 = vmatpush1.bf16.msra.mxu0 %v650
        %661 = vmatprep.subr.bf16.mxu0 0
        %662 = vmatpush1.bf16.msra.mxu0 %v649
        %663 = vmatprep.subr.bf16.mxu0 0
        %664 = vmatpush1.bf16.msra.mxu0 %v648
        %665 = vmatprep.subr.bf16.mxu0 0
        %666 = vmatpush1.bf16.msra.mxu0 %v647
        %667 = vmatprep.subr.bf16.mxu0 0
        %668 = vmatpush1.bf16.msra.mxu0 %v646
        %669 = vmatprep.subr.bf16.mxu0 0
        %670 = vmatpush1.bf16.msra.mxu0 %v645
        %671 = vmatprep.subr.bf16.mxu0 0
        %672 = vmatpush1.bf16.msra.mxu0 %v644
        %673 = vmatprep.subr.bf16.mxu0 0
        %674 = vmatpush1.bf16.msra.mxu0 %v643
        %675 = vmatprep.subr.bf16.mxu0 0
        %676 = vmatpush2.bf16.msra.mxu0 0
        %677 = vmatprep.subr.bf16.mxu0 0
        %678 = vmatpush2.bf16.msra.mxu0 0
        %679 = vmatprep.subr.bf16.mxu0 0
        %680 = vmatpush2.bf16.msra.mxu0 0
        %681 = vmatprep.subr.bf16.mxu0 0
        %682 = vmatpush2.bf16.msra.mxu0 0
        %683 = vmatprep.subr.bf16.mxu0 0
        %684 = vmatpush2.bf16.msra.mxu0 0
        %685 = vmatprep.subr.bf16.mxu0 0
        %686 = vmatpush2.bf16.msra.mxu0 0
        %687 = vmatprep.subr.bf16.mxu0 0
        %688 = vmatpush2.bf16.msra.mxu0 0
        %689 = vmatprep.subr.bf16.mxu0 0
        %690 = vmatpush2.bf16.msra.mxu0 0
        %691 = vmatprep.mubr.bf16.mxu0 0
        %692 = vmatmul.mubr.bf16.gmra.mxu0 %v610
        %v693 = vpop.f32.mrf.mxu0
        %v694 = vadd.f32 0.0, %v693
        %v695 = vpop.f32.mrf.mxu0
        %v696 = vpop.f32.mrf.mxu0
        %v697 = vadd.f32 0.0, %v696
        %v698 = vpop.f32.mrf.mxu0
        %699 = vdwg.mxu0
        %v700 = vadd.f32 %v608, %v694
        %v701 = vadd.f32 %v609, %v697
        %702 = vst [vmem:[#allocation2] sm:$0xff] %v700
        %703 = vst [vmem:[#allocation2 + $0x8] sm:$0xff] %v701
        %p704 = scmp.eq.s32.totalorder %s30, 1
        // Predicated region
        $region57: #{tpu_custom_call.1} parent=35 // pred_check
          %p705 = pneg %p704
        $region58: #{tpu_custom_call.1} parent=35 // pred_check_branch
          %707 = sbr.rel (%p705) target = $region60
        $region59: #{tpu_custom_call.1} parent=35 // pred_region
          %v708 = vld [vmem:[#allocation2] sm:$0xff]
          %v709 = vld [vmem:[#allocation2 + $0x8] sm:$0xff]
          %v710 = vpack.c.bf16 %v709, %v708
          %v712 = vunpack.c.l.b16 %v710
          %v713 = vunpack.c.h.b16 %v710
          %v714 = vpack.c.b16 %v712, %v712
          %v715 = vpack.c.b16 %v713, %v713
          %718 = vst [vmem:[#allocation11] sm:$0xf] %v714
          %719 = vst [vmem:[#allocation11 + $0x4] sm:$0xf] %v715
        $region60: #{tpu_custom_call.1} parent=35 // pred_fallthru
          _
        // Predicated region
        $region61: #{tpu_custom_call.1} parent=35 // pred_check
          %p720 = pneg %p176
        $region62: #{tpu_custom_call.1} parent=35 // pred_check_branch
          %722 = sbr.rel (%p720) target = $region64
        $region63: #{tpu_custom_call.1} parent=35 // pred_region
          %s723 = smul.u32 2, %s29
          %s725 = ssub.s32 128, 128
          %726 = vsyncadd [#allocation5], %s725
          %s727 = smul.addr %s28, 4
          %s728 = sadd.s32 %s723, %s727
          %s729 = smul.addr %s728, 64
          %s730 = scalar_lea.hbm %s4, %s729
          %s731 = sshll.u32 [#allocation11], 4
          %s732 = int_to_ptr.vmem [resolvable:$true] %s731
          %737 = dma.vmem_to_hbm [thread:$0]  %s732, 128, %s730, [#allocation5], 64, 64, 4
        $region64: #{tpu_custom_call.1} parent=35 // pred_fallthru
          _
        // Predicated region
        $region65: #{tpu_custom_call.1} parent=35 // pred_check
          %p738 = pneg %p176
        $region66: #{tpu_custom_call.1} parent=35 // pred_check_branch
          %740 = sbr.rel (%p738) target = $region68
        $region67: #{tpu_custom_call.1} parent=35 // pred_region
          %741 = dma.done [#allocation5], 128
        $region68: #{tpu_custom_call.1} parent=35 // pred_fallthru
          _
      $region36: #{tpu_custom_call.1} parent=5 // pred_fallthru
        _
      %p742 = scmp.le.s32.totalorder 2, %s18
      // Predicated region
      $region69: #{tpu_custom_call.1} parent=5 // pred_check
        %p743 = pneg %p742
      $region70: #{tpu_custom_call.1} parent=5 // pred_check_branch
        %745 = sbr.rel (%p743) target = $region72
      $region71: #{tpu_custom_call.1} parent=5 // pred_region
        %s746 = ssub.s32 %s18, 2
      $region72: #{tpu_custom_call.1} parent=5 // pred_fallthru
        _
    $region6: #{tpu_custom_call.1} parent=1 // loop_footer
      %s22 = sadd.s32 1, %s18
    $region7: #{tpu_custom_call.1} parent=1 // loop_footer_branch
      %17 = sbr.rel target = $region3
    $region8: #{tpu_custom_call.1} parent=1 // loop_exit
      _
    %747 = vsyncpa [#allocation4], 1
    %s748 = scalar_lea.sflag [#allocation4], 1
    %749 = vsyncpa %s748, 1
    %750 = vsyncpa [#allocation7], 1
    %s751 = scalar_lea.sflag [#allocation7], 1
    %752 = vsyncpa %s751, 1
    %753 = vsyncpa [#allocation10], 1
    %s754 = scalar_lea.sflag [#allocation10], 1
    %755 = vsyncpa %s754, 1
    %756 = vsyncpa [#allocation5], 1
    %s757 = scalar_lea.sflag [#allocation5], 1
    %758 = vsyncpa %s757, 1

// kernel: tpu_custom_call.1
$region0: #{tpu_custom_call.1}
  #allocation0 [shape = 'u32[]', space=smem, size = 0x4, offset = 0x4, fixed_abs, tag = 'smem constant byte address 0x4 - core index']
  #allocation1 [shape = 'u32[144,128]{1,0:T(1,128)}', space=vmem, size = 0x12000, scoped, tag = 'internal scratch']
  #allocation2 [shape = 'f32[16,128]{1,0:T(8,128)}', space=vmem, size = 0x2000, scoped, tag = 'scratch operand']
  %s0 = inlined_call_operand.hbm [shape: bf16[2,32,128], index: 0, kind: input, shape index: {}]
  %s1 = inlined_call_operand.hbm [shape: bf16[2,128,512], index: 1, kind: input, shape index: {}]
  %s2 = inlined_call_operand.hbm [shape: bf16[2,128,512], index: 2, kind: input, shape index: {}]
  %s3 = inlined_call_operand.hbm [shape: bf16[2,256,128], index: 3, kind: input, shape index: {}]
  %s4 = inlined_call_operand.hbm [shape: bf16[2,32,128], index: 4, kind: output, shape index: {}]
  %s5 = sld [smem:[#allocation0]]
  $region73: #{tpu_custom_call.1} parent=0
    _
  %s7 = ssub.s32 1, %s5
  %s8 = scalar_select 0, %s7, %s5
  $region1: #{tpu_custom_call.1} parent=0
    #allocation3 [shape = 'u8[8192]{0}', space=vmem, size = 0x2000, scoped, tag = 'input window, operand 0']
    #allocation4 [shape = 's32[2]{0}', space=sflag, size = 0x8, scoped, tag = 'scoped memory for tpu_custom_call.1']
    #allocation5 [shape = 's32[2]{0}', space=sflag, size = 0x8, scoped, tag = 'scoped memory for tpu_custom_call.1']
    #allocation6 [shape = 'u8[65536]{0}', space=vmem, size = 0x10000, scoped, tag = 'input window, operand 1']
    #allocation7 [shape = 's32[2]{0}', space=sflag, size = 0x8, scoped, tag = 'scoped memory for tpu_custom_call.1']
    #allocation8 [shape = 'u8[65536]{0}', space=vmem, size = 0x10000, scoped, tag = 'input window, operand 2']
    #allocation9 [shape = 'u8[65536]{0}', space=vmem, size = 0x10000, scoped, tag = 'input window, operand 3']
    #allocation10 [shape = 's32[2]{0}', space=sflag, size = 0x8, scoped, tag = 'scoped memory for tpu_custom_call.1']
    #allocation11 [shape = 'u8[8192]{0}', space=vmem, size = 0x2000, scoped, tag = 'output window, operand 0']
    %9 = vsyncpa [#allocation4], 0
    %s10 = scalar_lea.sflag [#allocation4], 1
    %11 = vsyncpa %s10, 0
    %12 = vsyncpa [#allocation7], 0
    %s13 = scalar_lea.sflag [#allocation7], 1
    %14 = vsyncpa %s13, 0
    %15 = vsyncpa [#allocation10], 0
    %s16 = scalar_lea.sflag [#allocation10], 1
    %17 = vsyncpa %s16, 0
    %18 = vsyncpa [#allocation5], 0
    %s19 = scalar_lea.sflag [#allocation5], 1
    %20 = vsyncpa %s19, 0
    loop: start=0, step=1, limit=10
    $region2: #{tpu_custom_call.1} parent=1 // loop_pre_header
      _
    $region3: #{tpu_custom_call.1} parent=1 // loop_header
      %s22 = sphi 0, %s26
      %p23 = scmp.ge.s32.totalorder %s22, 10
      %s29 = sphi 0, %s48
      %s30 = sphi 0, %s44
      %s31 = sphi 0, %s40
      %s32 = sphi 0, %s29
      %s33 = sphi 0, %s30
      %s34 = sphi 0, %s31
      %s35 = sphi 0, %s32
      %s36 = sphi 0, %s33
      %s37 = sphi 0, %s34
      %s53 = sphi 0, %s55
      %s56 = sphi 0, %s53
      %s57 = sphi 0, %s56
      %s73 = sphi 0, %s57
      %s81 = sphi 0, %s83
      %s84 = sphi 0, %s81
      %s85 = sphi 0, %s84
      %s101 = sphi 0, %s85
      %s111 = sphi 0, %s113
      %s114 = sphi 0, %s111
      %s115 = sphi 0, %s114
      %s131 = sphi 0, %s115
      %s139 = sphi 0, %s141
      %s142 = sphi 0, %s139
      %s143 = sphi 0, %s142
      %s159 = sphi 0, %s143
      %s167 = sphi 0, %s169
      %s170 = sphi 0, %s167
      %s171 = sphi 0, %s170
      %s187 = sphi 0, %s171
    $region4: #{tpu_custom_call.1} parent=1 // loop_header_branch
      %25 = sbr.rel (%p23) target = $region8
    $region5: #{tpu_custom_call.1} parent=1 // loop_body
      %s27 = ssub.s32 %s22, 1
      %s28 = ssub.s32 %s22, 2
      %s38 = sadd.s32 1, %s31
      %p39 = scmp.ge.s32.totalorder %s38, 2
      %s40 = scalar_select %p39, 0, %s38
      %s41 = sadd.s32 1, %s30
      %s42 = scalar_select %p39, %s41, %s30
      %p43 = scmp.ge.s32.totalorder %s42, 2
      %s44 = scalar_select %p43, 0, %s42
      %s45 = sadd.s32 1, %s29
      %s46 = scalar_select %p43, %s45, %s29
      %p47 = scmp.ge.s32.totalorder %s46, 2
      %s48 = scalar_select %p47, 0, %s46
      %s49 = ssub.s32 %s29, %s48
      %s50 = ssub.s32 %s30, %s44
      %s51 = sor.u32 %s49, %s50
      %p52 = scmp.eq.s32.totalorder %s51, 0
      %s54 = sadd.s32 %s53, 1
      %s55 = scalar_select %p52, %s53, %s54
      %p58 = pneg %p52
      %p59 = scmp.eq.s32.totalorder %s22, 7
      %p60 = por %p58, %p59
      %p61 = scmp.ne.s32.totalorder %s53, %s56
      %p62 = scmp.eq.s32.totalorder %s22, 0
      %p63 = por %p61, %p62
      %p64 = scmp.ne.s32.totalorder %s53, %s56
      %p65 = scmp.eq.s32.totalorder %s27, 7
      %p66 = por %p64, %p65
      %p67 = scmp.ne.s32.totalorder %s56, %s57
      %p68 = scmp.eq.s32.totalorder %s27, 0
      %p69 = por %p67, %p68
      %p70 = scmp.ne.s32.totalorder %s56, %s57
      %p71 = scmp.eq.s32.totalorder %s28, 7
      %p72 = por %p70, %p71
      %p74 = scmp.ne.s32.totalorder %s57, %s73
      %p75 = scmp.eq.s32.totalorder %s28, 0
      %p76 = por %p74, %p75
      %s77 = ssub.s32 %s29, %s48
      %s78 = ssub.s32 %s31, %s40
      %s79 = sor.u32 %s77, %s78
      %p80 = scmp.eq.s32.totalorder %s79, 0
      %s82 = sadd.s32 %s81, 1
      %s83 = scalar_select %p80, %s81, %s82
      %p86 = pneg %p80
      %p87 = scmp.eq.s32.totalorder %s22, 7
      %p88 = por %p86, %p87
      %p89 = scmp.ne.s32.totalorder %s81, %s84
      %p90 = scmp.eq.s32.totalorder %s22, 0
      %p91 = por %p89, %p90
      %p92 = scmp.ne.s32.totalorder %s81, %s84
      %p93 = scmp.eq.s32.totalorder %s27, 7
      %p94 = por %p92, %p93
      %p95 = scmp.ne.s32.totalorder %s84, %s85
      %p96 = scmp.eq.s32.totalorder %s27, 0
      %p97 = por %p95, %p96
      %p98 = scmp.ne.s32.totalorder %s84, %s85
      %p99 = scmp.eq.s32.totalorder %s28, 7
      %p100 = por %p98, %p99
      %p102 = scmp.ne.s32.totalorder %s85, %s101
      %p103 = scmp.eq.s32.totalorder %s28, 0
      %p104 = por %p102, %p103
      %s105 = sadd.s32 %s31, 2
      %s106 = sadd.s32 %s40, 2
      %s107 = ssub.s32 %s29, %s48
      %s108 = ssub.s32 %s105, %s106
      %s109 = sor.u32 %s107, %s108
      %p110 = scmp.eq.s32.totalorder %s109, 0
      %s112 = sadd.s32 %s111, 1
      %s113 = scalar_select %p110, %s111, %s112
      %p116 = pneg %p110
      %p117 = scmp.eq.s32.totalorder %s22, 7
      %p118 = por %p116, %p117
      %p119 = scmp.ne.s32.totalorder %s111, %s114
      %p120 = scmp.eq.s32.totalorder %s22, 0
      %p121 = por %p119, %p120
      %p122 = scmp.ne.s32.totalorder %s111, %s114
      %p123 = scmp.eq.s32.totalorder %s27, 7
      %p124 = por %p122, %p123
      %p125 = scmp.ne.s32.totalorder %s114, %s115
      %p126 = scmp.eq.s32.totalorder %s27, 0
      %p127 = por %p125, %p126
      %p128 = scmp.ne.s32.totalorder %s114, %s115
      %p129 = scmp.eq.s32.totalorder %s28, 7
      %p130 = por %p128, %p129
      %p132 = scmp.ne.s32.totalorder %s115, %s131
      %p133 = scmp.eq.s32.totalorder %s28, 0
      %p134 = por %p132, %p133
      %s135 = ssub.s32 %s29, %s48
      %s136 = ssub.s32 %s31, %s40
      %s137 = sor.u32 %s135, %s136
      %p138 = scmp.eq.s32.totalorder %s137, 0
      %s140 = sadd.s32 %s139, 1
      %s141 = scalar_select %p138, %s139, %s140
      %p144 = pneg %p138
      %p145 = scmp.eq.s32.totalorder %s22, 7
      %p146 = por %p144, %p145
      %p147 = scmp.ne.s32.totalorder %s139, %s142
      %p148 = scmp.eq.s32.totalorder %s22, 0
      %p149 = por %p147, %p148
      %p150 = scmp.ne.s32.totalorder %s139, %s142
      %p151 = scmp.eq.s32.totalorder %s27, 7
      %p152 = por %p150, %p151
      %p153 = scmp.ne.s32.totalorder %s142, %s143
      %p154 = scmp.eq.s32.totalorder %s27, 0
      %p155 = por %p153, %p154
      %p156 = scmp.ne.s32.totalorder %s142, %s143
      %p157 = scmp.eq.s32.totalorder %s28, 7
      %p158 = por %p156, %p157
      %p160 = scmp.ne.s32.totalorder %s143, %s159
      %p161 = scmp.eq.s32.totalorder %s28, 0
      %p162 = por %p160, %p161
      %s163 = ssub.s32 %s29, %s48
      %s164 = ssub.s32 %s30, %s44
      %s165 = sor.u32 %s163, %s164
      %p166 = scmp.eq.s32.totalorder %s165, 0
      %s168 = sadd.s32 %s167, 1
      %s169 = scalar_select %p166, %s167, %s168
      %p172 = pneg %p166
      %p173 = scmp.eq.s32.totalorder %s22, 7
      %p174 = por %p172, %p173
      %p175 = scmp.ne.s32.totalorder %s167, %s170
      %p176 = scmp.eq.s32.totalorder %s22, 0
      %p177 = por %p175, %p176
      %p178 = scmp.ne.s32.totalorder %s167, %s170
      %p179 = scmp.eq.s32.totalorder %s27, 7
      %p180 = por %p178, %p179
      %p181 = scmp.ne.s32.totalorder %s170, %s171
      %p182 = scmp.eq.s32.totalorder %s27, 0
      %p183 = por %p181, %p182
      %p184 = scmp.ne.s32.totalorder %s170, %s171
      %p185 = scmp.eq.s32.totalorder %s28, 7
      %p186 = por %p184, %p185
      %p188 = scmp.ne.s32.totalorder %s171, %s187
      %p189 = scmp.eq.s32.totalorder %s28, 0
      %p190 = por %p188, %p189
      %p191 = scmp.le.s32.totalorder 1, %s22
      %p192 = scmp.lt.s32.totalorder %s22, 9
      %p193 = pnand %p191, %p192
      %p194 = pneg %p193
      // Predicated region
      $region9: #{tpu_custom_call.1} parent=5 // pred_check
        _
      $region10: #{tpu_custom_call.1} parent=5 // pred_check_branch
        %196 = sbr.rel (%p193) target = $region12
      $region11: #{tpu_custom_call.1} parent=5 // pred_region
        %s197 = ssub.s32 %s22, 1
      $region12: #{tpu_custom_call.1} parent=5 // pred_fallthru
        _
      %p198 = scmp.lt.s32.totalorder %s22, 8
      // Predicated region
      $region13: #{tpu_custom_call.1} parent=5 // pred_check
        %p199 = pneg %p198
      $region14: #{tpu_custom_call.1} parent=5 // pred_check_branch
        %201 = sbr.rel (%p199) target = $region16
      $region15: #{tpu_custom_call.1} parent=5 // pred_region
        // Predicated region
        $region17: #{tpu_custom_call.1} parent=15 // pred_check
          %p202 = pneg %p63
        $region18: #{tpu_custom_call.1} parent=15 // pred_check_branch
          %204 = sbr.rel (%p202) target = $region20
        $region19: #{tpu_custom_call.1} parent=15 // pred_region
          %s205 = sand.u32 %s53, 1
          %s206 = scalar_lea.sflag [#allocation4], %s205
          %s207 = sand.u32 %s53, 1
          %s208 = smul.addr %s207, 8
          %s209 = scalar_lea.vmem [#allocation3], %s208
          %s210 = smul.u32 2, %s30
          %s212 = ssub.s32 128, 128
          %213 = vsyncadd %s206, %s212
          %s214 = smul.addr %s29, 4
          %s215 = sadd.s32 %s210, %s214
          %s216 = smul.addr %s215, 64
          %s217 = scalar_lea.hbm %s0, %s216
          %s218 = sshll.u32 %s209, 4
          %s219 = int_to_ptr.vmem [resolvable:$true] %s218
          %224 = dma.hbm_to_vmem [thread:$0]  %s217, 128, %s219, %s206, 64, 64, 4
        $region20: #{tpu_custom_call.1} parent=15 // pred_fallthru
          _
        // Predicated region
        $region21: #{tpu_custom_call.1} parent=15 // pred_check
          %p225 = pneg %p91
        $region22: #{tpu_custom_call.1} parent=15 // pred_check_branch
          %227 = sbr.rel (%p225) target = $region24
        $region23: #{tpu_custom_call.1} parent=15 // pred_region
          %s228 = sand.u32 %s22, 1
          %s229 = scalar_lea.sflag [#allocation7], %s228
          %s230 = sand.u32 %s81, 1
          %s231 = smul.addr %s230, 64
          %s232 = scalar_lea.vmem [#allocation6], %s231
          %s234 = ssub.s32 1024, 1024
          %235 = vsyncadd %s229, %s234
          %s236 = smul.addr %s29, 64
          %s237 = sadd.s32 %s31, %s236
          %s238 = smul.addr %s237, 64
          %s239 = scalar_lea.hbm %s1, %s238
          %s240 = sshll.u32 %s232, 4
          %s241 = int_to_ptr.vmem [resolvable:$true] %s240
          %246 = dma.hbm_to_vmem [thread:$0]  %s239, 1024, %s241, %s229, 256, 64, 4
        $region24: #{tpu_custom_call.1} parent=15 // pred_fallthru
          _
        // Predicated region
        $region25: #{tpu_custom_call.1} parent=15 // pred_check
          %p247 = pneg %p121
        $region26: #{tpu_custom_call.1} parent=15 // pred_check_branch
          %249 = sbr.rel (%p247) target = $region28
        $region27: #{tpu_custom_call.1} parent=15 // pred_region
          %s250 = sand.u32 %s22, 1
          %s251 = scalar_lea.sflag [#allocation7], %s250
          %s252 = sand.u32 %s111, 1
          %s253 = smul.addr %s252, 64
          %s254 = scalar_lea.vmem [#allocation8], %s253
          %s255 = sadd.s32 %s31, 2
          %s257 = ssub.s32 1024, 1024
          %258 = vsyncadd %s251, %s257
          %s259 = smul.addr %s29, 64
          %s260 = sadd.s32 %s255, %s259
          %s261 = smul.addr %s260, 64
          %s262 = scalar_lea.hbm %s2, %s261
          %s263 = sshll.u32 %s254, 4
          %s264 = int_to_ptr.vmem [resolvable:$true] %s263
          %269 = dma.hbm_to_vmem [thread:$0]  %s262, 1024, %s264, %s251, 256, 64, 4
        $region28: #{tpu_custom_call.1} parent=15 // pred_fallthru
          _
        // Predicated region
        $region29: #{tpu_custom_call.1} parent=15 // pred_check
          %p270 = pneg %p149
        $region30: #{tpu_custom_call.1} parent=15 // pred_check_branch
          %272 = sbr.rel (%p270) target = $region32
        $region31: #{tpu_custom_call.1} parent=15 // pred_region
          %s273 = sand.u32 %s139, 1
          %s274 = scalar_lea.sflag [#allocation10], %s273
          %s275 = sand.u32 %s139, 1
          %s276 = smul.addr %s275, 64
          %s277 = scalar_lea.vmem [#allocation9], %s276
          %s278 = smul.u32 16, %s31
          %s280 = ssub.s32 1024, 1024
          %281 = vsyncadd %s274, %s280
          %s282 = smul.addr %s29, 32
          %s283 = sadd.s32 %s278, %s282
          %s284 = smul.addr %s283, 64
          %s285 = scalar_lea.hbm %s3, %s284
          %s286 = sshll.u32 %s277, 4
          %s287 = int_to_ptr.vmem [resolvable:$true] %s286
          %292 = dma.hbm_to_vmem [thread:$0]  %s285, 1024, %s287, %s274, 64, 64, 4
        $region32: #{tpu_custom_call.1} parent=15 // pred_fallthru
          _
      $region16: #{tpu_custom_call.1} parent=5 // pred_fallthru
        _
      %p293 = scmp.le.s32.totalorder 1, %s22
      %p294 = scmp.lt.s32.totalorder %s22, 9
      %p295 = pnand %p293, %p294
      %p296 = pneg %p295
      // Predicated region
      $region33: #{tpu_custom_call.1} parent=5 // pred_check
        _
      $region34: #{tpu_custom_call.1} parent=5 // pred_check_branch
        %298 = sbr.rel (%p295) target = $region36
      $region35: #{tpu_custom_call.1} parent=5 // pred_region
        %s299 = ssub.s32 %s22, 1
        %s300 = sand.u32 %s56, 1
        %s301 = scalar_lea.sflag [#allocation4], %s300
        %s302 = sand.u32 %s56, 1
        %s303 = smul.addr %s302, 8
        %s304 = scalar_lea.vmem [#allocation3], %s303
        // Predicated region
        $region37: #{tpu_custom_call.1} parent=35 // pred_check
          %p305 = pneg %p69
        $region38: #{tpu_custom_call.1} parent=35 // pred_check_branch
          %307 = sbr.rel (%p305) target = $region40
        $region39: #{tpu_custom_call.1} parent=35 // pred_region
          %308 = dma.done %s301, 128
        $region40: #{tpu_custom_call.1} parent=35 // pred_fallthru
          _
        %s309 = sand.u32 %s27, 1
        %s310 = scalar_lea.sflag [#allocation7], %s309
        %s311 = sand.u32 %s84, 1
        %s312 = smul.addr %s311, 64
        %s313 = scalar_lea.vmem [#allocation6], %s312
        // Predicated region
        $region41: #{tpu_custom_call.1} parent=35 // pred_check
          %p314 = pneg %p97
        $region42: #{tpu_custom_call.1} parent=35 // pred_check_branch
          %316 = sbr.rel (%p314) target = $region44
        $region43: #{tpu_custom_call.1} parent=35 // pred_region
          %317 = dma.done %s310, 1024
        $region44: #{tpu_custom_call.1} parent=35 // pred_fallthru
          _
        %s318 = sand.u32 %s27, 1
        %s319 = scalar_lea.sflag [#allocation7], %s318
        %s320 = sand.u32 %s114, 1
        %s321 = smul.addr %s320, 64
        %s322 = scalar_lea.vmem [#allocation8], %s321
        // Predicated region
        $region45: #{tpu_custom_call.1} parent=35 // pred_check
          %p323 = pneg %p127
        $region46: #{tpu_custom_call.1} parent=35 // pred_check_branch
          %325 = sbr.rel (%p323) target = $region48
        $region47: #{tpu_custom_call.1} parent=35 // pred_region
          %326 = dma.done %s319, 1024
        $region48: #{tpu_custom_call.1} parent=35 // pred_fallthru
          _
        %s327 = sand.u32 %s142, 1
        %s328 = scalar_lea.sflag [#allocation10], %s327
        %s329 = sand.u32 %s142, 1
        %s330 = smul.addr %s329, 64
        %s331 = scalar_lea.vmem [#allocation9], %s330
        // Predicated region
        $region49: #{tpu_custom_call.1} parent=35 // pred_check
          %p332 = pneg %p155
        $region50: #{tpu_custom_call.1} parent=35 // pred_check_branch
          %334 = sbr.rel (%p332) target = $region52
        $region51: #{tpu_custom_call.1} parent=35 // pred_region
          %335 = dma.done %s328, 1024
        $region52: #{tpu_custom_call.1} parent=35 // pred_fallthru
          _
        %s336 = sand.u32 %s56, 1
        %s337 = scalar_lea.sflag [#allocation4], %s336
        %s338 = sand.u32 %s56, 1
        %s339 = smul.addr %s338, 8
        %s340 = scalar_lea.vmem [#allocation3], %s339
        %p341 = pneg %p69
        %p342 = pneg %p66
        %s343 = sand.u32 %s27, 1
        %s344 = scalar_lea.sflag [#allocation7], %s343
        %s345 = sand.u32 %s84, 1
        %s346 = smul.addr %s345, 64
        %s347 = scalar_lea.vmem [#allocation6], %s346
        %p348 = pneg %p97
        %p349 = pneg %p94
        %s350 = sand.u32 %s27, 1
        %s351 = scalar_lea.sflag [#allocation7], %s350
        %s352 = sand.u32 %s114, 1
        %s353 = smul.addr %s352, 64
        %s354 = scalar_lea.vmem [#allocation8], %s353
        %p355 = pneg %p127
        %p356 = pneg %p124
        %s357 = sand.u32 %s142, 1
        %s358 = scalar_lea.sflag [#allocation10], %s357
        %s359 = sand.u32 %s142, 1
        %s360 = smul.addr %s359, 64
        %s361 = scalar_lea.vmem [#allocation9], %s360
        %p362 = pneg %p155
        %p363 = pneg %p152
        %p364 = pneg %p183
        %p365 = pneg %p180
        %s366 = sand.u32 %s170, 1
        %s367 = scalar_lea.sflag [#allocation5], %s366
        %s368 = sand.u32 %s170, 1
        %s369 = smul.addr %s368, 8
        %s370 = scalar_lea.vmem [#allocation11], %s369
        %s371 = smul.u32 2, %s33
        %s372 = sadd.s32 %s34, 2
        %s373 = smul.u32 16, %s34
        %s374 = smul.u32 2, %s33
        %p376 = scmp.eq.s32.totalorder %s34, 0
        // Predicated region
        $region53: #{tpu_custom_call.1} parent=35 // pred_check
          %p377 = pneg %p376
        $region54: #{tpu_custom_call.1} parent=35 // pred_check_branch
          %379 = sbr.rel (%p377) target = $region56
        $region55: #{tpu_custom_call.1} parent=35 // pred_region
          %380 = vst [vmem:[#allocation2] sm:$0xff] 0.0
          %381 = vst [vmem:[#allocation2 + $0x8] sm:$0xff] 0.0
        $region56: #{tpu_custom_call.1} parent=35 // pred_fallthru
          _
        %v382 = vld [vmem:[%s304] sm:$0xf]
        %v383 = vld [vmem:[%s304 + $0x4] sm:$0xf]
        %v384 = vld [vmem:[%s313] sm:$0xf]
        %v385 = vld [vmem:[%s313 + $0x4] sm:$0xf]
        %v386 = vld [vmem:[%s313 + $0x8] sm:$0xf]
        %v387 = vld [vmem:[%s313 + $0xc] sm:$0xf]
        %v388 = vld [vmem:[%s313 + $0x10] sm:$0xf]
        %v389 = vld [vmem:[%s313 + $0x14] sm:$0xf]
        %v390 = vld [vmem:[%s313 + $0x18] sm:$0xf]
        %v391 = vld [vmem:[%s313 + $0x1c] sm:$0xf]
        %v392 = vld [vmem:[%s313 + $0x20] sm:$0xf]
        %v393 = vld [vmem:[%s313 + $0x24] sm:$0xf]
        %v394 = vld [vmem:[%s313 + $0x28] sm:$0xf]
        %v395 = vld [vmem:[%s313 + $0x2c] sm:$0xf]
        %v396 = vld [vmem:[%s313 + $0x30] sm:$0xf]
        %v397 = vld [vmem:[%s313 + $0x34] sm:$0xf]
        %v398 = vld [vmem:[%s313 + $0x38] sm:$0xf]
        %v399 = vld [vmem:[%s313 + $0x3c] sm:$0xf]
        %v400 = vld [vmem:[%s322] sm:$0xf]
        %v401 = vld [vmem:[%s322 + $0x4] sm:$0xf]
        %v402 = vld [vmem:[%s322 + $0x8] sm:$0xf]
        %v403 = vld [vmem:[%s322 + $0xc] sm:$0xf]
        %v404 = vld [vmem:[%s322 + $0x10] sm:$0xf]
        %v405 = vld [vmem:[%s322 + $0x14] sm:$0xf]
        %v406 = vld [vmem:[%s322 + $0x18] sm:$0xf]
        %v407 = vld [vmem:[%s322 + $0x1c] sm:$0xf]
        %v408 = vld [vmem:[%s322 + $0x20] sm:$0xf]
        %v409 = vld [vmem:[%s322 + $0x24] sm:$0xf]
        %v410 = vld [vmem:[%s322 + $0x28] sm:$0xf]
        %v411 = vld [vmem:[%s322 + $0x2c] sm:$0xf]
        %v412 = vld [vmem:[%s322 + $0x30] sm:$0xf]
        %v413 = vld [vmem:[%s322 + $0x34] sm:$0xf]
        %v414 = vld [vmem:[%s322 + $0x38] sm:$0xf]
        %v415 = vld [vmem:[%s322 + $0x3c] sm:$0xf]
        %v416 = vld [vmem:[%s331] sm:$0xf]
        %v417 = vld [vmem:[%s331 + $0x4] sm:$0xf]
        %v418 = vld [vmem:[%s331 + $0x8] sm:$0xf]
        %v419 = vld [vmem:[%s331 + $0xc] sm:$0xf]
        %v420 = vld [vmem:[%s331 + $0x10] sm:$0xf]
        %v421 = vld [vmem:[%s331 + $0x14] sm:$0xf]
        %v422 = vld [vmem:[%s331 + $0x18] sm:$0xf]
        %v423 = vld [vmem:[%s331 + $0x1c] sm:$0xf]
        %v424 = vld [vmem:[%s331 + $0x20] sm:$0xf]
        %v425 = vld [vmem:[%s331 + $0x24] sm:$0xf]
        %v426 = vld [vmem:[%s331 + $0x28] sm:$0xf]
        %v427 = vld [vmem:[%s331 + $0x2c] sm:$0xf]
        %v428 = vld [vmem:[%s331 + $0x30] sm:$0xf]
        %v429 = vld [vmem:[%s331 + $0x34] sm:$0xf]
        %v430 = vld [vmem:[%s331 + $0x38] sm:$0xf]
        %v431 = vld [vmem:[%s331 + $0x3c] sm:$0xf]
        %v434 = vunpack.c.l.b16 %v382
        %v435 = vunpack.c.l.b16 %v383
        %v436 = vpack.c.b16 %v435, %v434
        %v454 = vunpack.c.l.b16 %v384
        %v455 = vunpack.c.l.b16 %v385
        %v456 = vunpack.c.l.b16 %v386
        %v457 = vunpack.c.l.b16 %v387
        %v458 = vunpack.c.l.b16 %v388
        %v459 = vunpack.c.l.b16 %v389
        %v460 = vunpack.c.l.b16 %v390
        %v461 = vunpack.c.l.b16 %v391
        %v462 = vunpack.c.l.b16 %v392
        %v463 = vunpack.c.l.b16 %v393
        %v464 = vunpack.c.l.b16 %v394
        %v465 = vunpack.c.l.b16 %v395
        %v466 = vunpack.c.l.b16 %v396
        %v467 = vunpack.c.l.b16 %v397
        %v468 = vunpack.c.l.b16 %v398
        %v469 = vunpack.c.l.b16 %v399
        %v470 = vpack.c.b16 %v455, %v454
        %v471 = vpack.c.b16 %v457, %v456
        %v472 = vpack.c.b16 %v459, %v458
        %v473 = vpack.c.b16 %v461, %v460
        %v474 = vpack.c.b16 %v463, %v462
        %v475 = vpack.c.b16 %v465, %v464
        %v476 = vpack.c.b16 %v467, %v466
        %v477 = vpack.c.b16 %v469, %v468
        %486 = vmatprep.subr.bf16.mxu0 0
        %487 = vmatpush1.bf16.msra.mxu0 %v477
        %488 = vmatprep.subr.bf16.mxu0 0
        %489 = vmatpush1.bf16.msra.mxu0 %v476
        %490 = vmatprep.subr.bf16.mxu0 0
        %491 = vmatpush1.bf16.msra.mxu0 %v475
        %492 = vmatprep.subr.bf16.mxu0 0
        %493 = vmatpush1.bf16.msra.mxu0 %v474
        %494 = vmatprep.subr.bf16.mxu0 0
        %495 = vmatpush1.bf16.msra.mxu0 %v473
        %496 = vmatprep.subr.bf16.mxu0 0
        %497 = vmatpush1.bf16.msra.mxu0 %v472
        %498 = vmatprep.subr.bf16.mxu0 0
        %499 = vmatpush1.bf16.msra.mxu0 %v471
        %500 = vmatprep.subr.bf16.mxu0 0
        %501 = vmatpush1.bf16.msra.mxu0 %v470
        %502 = vmatprep.subr.bf16.mxu0 0
        %503 = vmatpush2.bf16.msra.mxu0 0
        %504 = vmatprep.subr.bf16.mxu0 0
        %505 = vmatpush2.bf16.msra.mxu0 0
        %506 = vmatprep.subr.bf16.mxu0 0
        %507 = vmatpush2.bf16.msra.mxu0 0
        %508 = vmatprep.subr.bf16.mxu0 0
        %509 = vmatpush2.bf16.msra.mxu0 0
        %510 = vmatprep.subr.bf16.mxu0 0
        %511 = vmatpush2.bf16.msra.mxu0 0
        %512 = vmatprep.subr.bf16.mxu0 0
        %513 = vmatpush2.bf16.msra.mxu0 0
        %514 = vmatprep.subr.bf16.mxu0 0
        %515 = vmatpush2.bf16.msra.mxu0 0
        %516 = vmatprep.subr.bf16.mxu0 0
        %517 = vmatpush2.bf16.msra.mxu0 0
        %518 = vmatprep.mubr.bf16.mxu0 0
        %519 = vmatmul.mubr.bf16.gmra.mxu0 %v436
        %v520 = vpop.f32.mrf.mxu0
        %v521 = vadd.f32 0.0, %v520
        %v522 = vpop.f32.mrf.mxu0
        %v523 = vpop.f32.mrf.mxu0
        %v524 = vadd.f32 0.0, %v523
        %v525 = vpop.f32.mrf.mxu0
        %526 = vdwg.mxu0
        %v543 = vunpack.c.l.b16 %v400
        %v544 = vunpack.c.l.b16 %v401
        %v545 = vunpack.c.l.b16 %v402
        %v546 = vunpack.c.l.b16 %v403
        %v547 = vunpack.c.l.b16 %v404
        %v548 = vunpack.c.l.b16 %v405
        %v549 = vunpack.c.l.b16 %v406
        %v550 = vunpack.c.l.b16 %v407
        %v551 = vunpack.c.l.b16 %v408
        %v552 = vunpack.c.l.b16 %v409
        %v553 = vunpack.c.l.b16 %v410
        %v554 = vunpack.c.l.b16 %v411
        %v555 = vunpack.c.l.b16 %v412
        %v556 = vunpack.c.l.b16 %v413
        %v557 = vunpack.c.l.b16 %v414
        %v558 = vunpack.c.l.b16 %v415
        %v559 = vpack.c.b16 %v544, %v543
        %v560 = vpack.c.b16 %v546, %v545
        %v561 = vpack.c.b16 %v548, %v547
        %v562 = vpack.c.b16 %v550, %v549
        %v563 = vpack.c.b16 %v552, %v551
        %v564 = vpack.c.b16 %v554, %v553
        %v565 = vpack.c.b16 %v556, %v555
        %v566 = vpack.c.b16 %v558, %v557
        %575 = vmatprep.subr.bf16.mxu0 0
        %576 = vmatpush1.bf16.msra.mxu0 %v566
        %577 = vmatprep.subr.bf16.mxu0 0
        %578 = vmatpush1.bf16.msra.mxu0 %v565
        %579 = vmatprep.subr.bf16.mxu0 0
        %580 = vmatpush1.bf16.msra.mxu0 %v564
        %581 = vmatprep.subr.bf16.mxu0 0
        %582 = vmatpush1.bf16.msra.mxu0 %v563
        %583 = vmatprep.subr.bf16.mxu0 0
        %584 = vmatpush1.bf16.msra.mxu0 %v562
        %585 = vmatprep.subr.bf16.mxu0 0
        %586 = vmatpush1.bf16.msra.mxu0 %v561
        %587 = vmatprep.subr.bf16.mxu0 0
        %588 = vmatpush1.bf16.msra.mxu0 %v560
        %589 = vmatprep.subr.bf16.mxu0 0
        %590 = vmatpush1.bf16.msra.mxu0 %v559
        %591 = vmatprep.subr.bf16.mxu0 0
        %592 = vmatpush2.bf16.msra.mxu0 0
        %593 = vmatprep.subr.bf16.mxu0 0
        %594 = vmatpush2.bf16.msra.mxu0 0
        %595 = vmatprep.subr.bf16.mxu0 0
        %596 = vmatpush2.bf16.msra.mxu0 0
        %597 = vmatprep.subr.bf16.mxu0 0
        %598 = vmatpush2.bf16.msra.mxu0 0
        %599 = vmatprep.subr.bf16.mxu0 0
        %600 = vmatpush2.bf16.msra.mxu0 0
        %601 = vmatprep.subr.bf16.mxu0 0
        %602 = vmatpush2.bf16.msra.mxu0 0
        %603 = vmatprep.subr.bf16.mxu0 0
        %604 = vmatpush2.bf16.msra.mxu0 0
        %605 = vmatprep.subr.bf16.mxu0 0
        %606 = vmatpush2.bf16.msra.mxu0 0
        %607 = vmatprep.mubr.bf16.mxu0 0
        %608 = vmatmul.mubr.bf16.gmra.mxu0 %v436
        %v609 = vpop.f32.mrf.mxu0
        %v610 = vadd.f32 0.0, %v609
        %v611 = vpop.f32.mrf.mxu0
        %v612 = vpop.f32.mrf.mxu0
        %v613 = vadd.f32 0.0, %v612
        %v614 = vpop.f32.mrf.mxu0
        %615 = vdwg.mxu0
        %v616 = vxor.u32 %v521, 2147483648
        %v617 = vxor.u32 %v524, 2147483648
        %v618 = vmul.f32 %v616, 1.442695
        %v619 = vpow.pop %v618
        %v620 = vmul.f32 %v617, 1.442695
        %v621 = vpow.pop %v620
        %v622 = vadd.f32 %v619, 1.0
        %v623 = vadd.f32 %v621, 1.0
        %v624 = vrcp.pop %v622
        %v625 = vmul.f32 1.0, %v624
        %v626 = vrcp.pop %v623
        %v627 = vmul.f32 1.0, %v626
        %v628 = vmul.f32 %v521, %v625
        %v629 = vmul.f32 %v524, %v627
        %v630 = vmul.f32 %v610, %v628
        %v631 = vmul.f32 %v613, %v629
        %v632 = vld [vmem:[#allocation2] sm:$0xff]
        %v633 = vld [vmem:[#allocation2 + $0x8] sm:$0xff]
        %v634 = vpack.c.bf16 %v631, %v630
        %v651 = vunpack.c.l.b16 %v416
        %v652 = vunpack.c.l.b16 %v417
        %v653 = vunpack.c.l.b16 %v418
        %v654 = vunpack.c.l.b16 %v419
        %v655 = vunpack.c.l.b16 %v420
        %v656 = vunpack.c.l.b16 %v421
        %v657 = vunpack.c.l.b16 %v422
        %v658 = vunpack.c.l.b16 %v423
        %v659 = vunpack.c.l.b16 %v424
        %v660 = vunpack.c.l.b16 %v425
        %v661 = vunpack.c.l.b16 %v426
        %v662 = vunpack.c.l.b16 %v427
        %v663 = vunpack.c.l.b16 %v428
        %v664 = vunpack.c.l.b16 %v429
        %v665 = vunpack.c.l.b16 %v430
        %v666 = vunpack.c.l.b16 %v431
        %v667 = vpack.c.b16 %v652, %v651
        %v668 = vpack.c.b16 %v654, %v653
        %v669 = vpack.c.b16 %v656, %v655
        %v670 = vpack.c.b16 %v658, %v657
        %v671 = vpack.c.b16 %v660, %v659
        %v672 = vpack.c.b16 %v662, %v661
        %v673 = vpack.c.b16 %v664, %v663
        %v674 = vpack.c.b16 %v666, %v665
        %683 = vmatprep.subr.bf16.mxu0 0
        %684 = vmatpush1.bf16.msra.mxu0 %v674
        %685 = vmatprep.subr.bf16.mxu0 0
        %686 = vmatpush1.bf16.msra.mxu0 %v673
        %687 = vmatprep.subr.bf16.mxu0 0
        %688 = vmatpush1.bf16.msra.mxu0 %v672
        %689 = vmatprep.subr.bf16.mxu0 0
        %690 = vmatpush1.bf16.msra.mxu0 %v671
        %691 = vmatprep.subr.bf16.mxu0 0
        %692 = vmatpush1.bf16.msra.mxu0 %v670
        %693 = vmatprep.subr.bf16.mxu0 0
        %694 = vmatpush1.bf16.msra.mxu0 %v669
        %695 = vmatprep.subr.bf16.mxu0 0
        %696 = vmatpush1.bf16.msra.mxu0 %v668
        %697 = vmatprep.subr.bf16.mxu0 0
        %698 = vmatpush1.bf16.msra.mxu0 %v667
        %699 = vmatprep.subr.bf16.mxu0 0
        %700 = vmatpush2.bf16.msra.mxu0 0
        %701 = vmatprep.subr.bf16.mxu0 0
        %702 = vmatpush2.bf16.msra.mxu0 0
        %703 = vmatprep.subr.bf16.mxu0 0
        %704 = vmatpush2.bf16.msra.mxu0 0
        %705 = vmatprep.subr.bf16.mxu0 0
        %706 = vmatpush2.bf16.msra.mxu0 0
        %707 = vmatprep.subr.bf16.mxu0 0
        %708 = vmatpush2.bf16.msra.mxu0 0
        %709 = vmatprep.subr.bf16.mxu0 0
        %710 = vmatpush2.bf16.msra.mxu0 0
        %711 = vmatprep.subr.bf16.mxu0 0
        %712 = vmatpush2.bf16.msra.mxu0 0
        %713 = vmatprep.subr.bf16.mxu0 0
        %714 = vmatpush2.bf16.msra.mxu0 0
        %715 = vmatprep.mubr.bf16.mxu0 0
        %716 = vmatmul.mubr.bf16.gmra.mxu0 %v634
        %v717 = vpop.f32.mrf.mxu0
        %v718 = vadd.f32 0.0, %v717
        %v719 = vpop.f32.mrf.mxu0
        %v720 = vpop.f32.mrf.mxu0
        %v721 = vadd.f32 0.0, %v720
        %v722 = vpop.f32.mrf.mxu0
        %723 = vdwg.mxu0
        %v724 = vadd.f32 %v632, %v718
        %v725 = vadd.f32 %v633, %v721
        %726 = vst [vmem:[#allocation2] sm:$0xff] %v724
        %727 = vst [vmem:[#allocation2 + $0x8] sm:$0xff] %v725
        %p728 = scmp.eq.s32.totalorder %s34, 1
        // Predicated region
        $region57: #{tpu_custom_call.1} parent=35 // pred_check
          %p729 = pneg %p728
        $region58: #{tpu_custom_call.1} parent=35 // pred_check_branch
          %731 = sbr.rel (%p729) target = $region60
        $region59: #{tpu_custom_call.1} parent=35 // pred_region
          %v732 = vld [vmem:[#allocation2] sm:$0xff]
          %v733 = vld [vmem:[#allocation2 + $0x8] sm:$0xff]
          %v734 = vpack.c.bf16 %v733, %v732
          %v736 = vunpack.c.l.b16 %v734
          %v737 = vunpack.c.h.b16 %v734
          %v738 = vpack.c.b16 %v736, %v736
          %v739 = vpack.c.b16 %v737, %v737
          %742 = vst [vmem:[%s370] sm:$0xf] %v738
          %743 = vst [vmem:[%s370 + $0x4] sm:$0xf] %v739
        $region60: #{tpu_custom_call.1} parent=35 // pred_fallthru
          _
        %s744 = sand.u32 %s170, 1
        %s745 = scalar_lea.sflag [#allocation5], %s744
        %s746 = sand.u32 %s170, 1
        %s747 = smul.addr %s746, 8
        %s748 = scalar_lea.vmem [#allocation11], %s747
        // Predicated region
        $region61: #{tpu_custom_call.1} parent=35 // pred_check
          %p749 = pneg %p180
        $region62: #{tpu_custom_call.1} parent=35 // pred_check_branch
          %751 = sbr.rel (%p749) target = $region64
        $region63: #{tpu_custom_call.1} parent=35 // pred_region
          %s752 = smul.u32 2, %s33
          %s754 = ssub.s32 128, 128
          %755 = vsyncadd %s745, %s754
          %s756 = smul.addr %s32, 4
          %s757 = sadd.s32 %s752, %s756
          %s758 = smul.addr %s757, 64
          %s759 = scalar_lea.hbm %s4, %s758
          %s760 = sshll.u32 %s748, 4
          %s761 = int_to_ptr.vmem [resolvable:$true] %s760
          %766 = dma.vmem_to_hbm [thread:$0]  %s761, 128, %s759, %s745, 64, 64, 4
        $region64: #{tpu_custom_call.1} parent=35 // pred_fallthru
          _
      $region36: #{tpu_custom_call.1} parent=5 // pred_fallthru
        _
      %p767 = scmp.le.s32.totalorder 2, %s22
      // Predicated region
      $region65: #{tpu_custom_call.1} parent=5 // pred_check
        %p768 = pneg %p767
      $region66: #{tpu_custom_call.1} parent=5 // pred_check_branch
        %770 = sbr.rel (%p768) target = $region68
      $region67: #{tpu_custom_call.1} parent=5 // pred_region
        %s771 = ssub.s32 %s22, 2
        // Predicated region
        $region69: #{tpu_custom_call.1} parent=67 // pred_check
          %p772 = pneg %p186
        $region70: #{tpu_custom_call.1} parent=67 // pred_check_branch
          %774 = sbr.rel (%p772) target = $region72
        $region71: #{tpu_custom_call.1} parent=67 // pred_region
          %s775 = sand.u32 %s171, 1
          %s776 = scalar_lea.sflag [#allocation5], %s775
          %s777 = sand.u32 %s171, 1
          %s778 = smul.addr %s777, 8
          %s779 = scalar_lea.vmem [#allocation11], %s778
          %780 = dma.done %s776, 128
        $region72: #{tpu_custom_call.1} parent=67 // pred_fallthru
          _
      $region68: #{tpu_custom_call.1} parent=5 // pred_fallthru
        _
    $region6: #{tpu_custom_call.1} parent=1 // loop_footer
      %s26 = sadd.s32 1, %s22
    $region7: #{tpu_custom_call.1} parent=1 // loop_footer_branch
      %21 = sbr.rel target = $region3
    $region8: #{tpu_custom_call.1} parent=1 // loop_exit
      _
    %781 = vsyncpa [#allocation4], 1
    %s782 = scalar_lea.sflag [#allocation4], 1
    %783 = vsyncpa %s782, 1
    %784 = vsyncpa [#allocation7], 1
    %s785 = scalar_lea.sflag [#allocation7], 1
    %786 = vsyncpa %s785, 1
    %787 = vsyncpa [#allocation10], 1
    %s788 = scalar_lea.sflag [#allocation10], 1
    %789 = vsyncpa %s788, 1
    %790 = vsyncpa [#allocation5], 1
    %s791 = scalar_lea.sflag [#allocation5], 1
    %792 = vsyncpa %s791, 1

</llo_original>
